<compile_context>
chip_gen: v5e
topology: v5e:2x2
jax: 0.10.0
libtpu: 0.0.40
codegen_flags: <defaults>
</compile_context>

<pallas_src>
import jax
import jax.numpy as jnp
from jax.experimental import pallas as pl
from jax.experimental.pallas import tpu as pltpu


def _vq_kernel(x_ref, emb_ref, embt_ref, esq_ref, q_ref, sse_ref):
    # x_ref:    (1, TP, D)   flattened activations for latent group n, row tile p
    # emb_ref:  (1, M, D)    codebook for group n
    # embt_ref: (1, D, M)    transposed codebook (avoids in-kernel transpose)
    # esq_ref:  (1, 1, M)    per-codeword squared norms
    # q_ref:    (1, TP, D)   quantized output tile
    # sse_ref:  (1, 1, 1, 1) per-(n, p) sum of squared errors (for the loss)
    x = x_ref[0]                         # (TP, D) f32
    emb = emb_ref[0]                     # (M, D)
    embt = embt_ref[0]                   # (D, M)
    esq = esq_ref[0]                     # (1, M)
    tp, _ = x.shape
    m = emb.shape[0]

    # Squared L2 distances: ||x||^2 + ||e||^2 - 2 x.e   -> (TP, M)
    x_sq = jnp.sum(x * x, axis=-1, keepdims=True)                    # (TP, 1)
    xe = jnp.dot(x, embt, preferred_element_type=jnp.float32)        # (TP, M) on MXU
    dist = (x_sq + esq) - 2.0 * xe

    # argmin along the codebook (lane) axis, first-index tie-break.
    lane = jax.lax.broadcasted_iota(jnp.int32, (tp, m), 1)
    min_d = jnp.min(dist, axis=-1, keepdims=True)                    # (TP, 1)
    idx = jnp.min(jnp.where(dist <= min_d, lane, m),
                  axis=-1, keepdims=True)                            # (TP, 1)
    onehot = (lane == idx).astype(jnp.float32)                       # (TP, M)

    # Gather the selected codewords via an exact one-hot matmul on the MXU.
    q = jnp.dot(onehot, emb, preferred_element_type=jnp.float32)     # (TP, D)
    q_ref[0] = q.astype(q_ref.dtype)

    # Partial sum of squared errors for the commitment loss.
    diff = x - q
    sse = jnp.sum(jnp.sum(diff * diff, axis=1, keepdims=True),
                  axis=0, keepdims=True)                             # (1, 1)
    sse_ref[0, 0] = sse


def vq_embedding_ema_forward(x, embedding, commitment_cost=0.25, tile_p=256):
    """Eval-mode forward of VQEmbeddingEMA.

    x:         (B, C, H, W) with C == latent_dim * embedding_dim
    embedding: (latent_dim, num_embeddings, embedding_dim)
    returns:   (loss, quantized (B, C, H, W))
    """
    B, C, H, W = x.shape
    N, M, D = embedding.shape
    assert C == N * D

    # (B, C, H, W) -> (B, N, D, H, W) -> (N, B, H, W, D) -> (N, P, D)
    P = B * H * W
    x_flat = jnp.transpose(x.reshape(B, N, D, H, W), (1, 0, 3, 4, 2))
    x_flat = x_flat.reshape(N, P, D).astype(jnp.float32)

    emb = embedding.astype(jnp.float32)                 # (N, M, D)
    emb_t = jnp.transpose(emb, (0, 2, 1))               # (N, D, M)
    e_sq = jnp.sum(emb * emb, axis=-1)[:, None, :]      # (N, 1, M)

    tp = min(tile_p, P)
    assert P % tp == 0, "tile_p must divide B*H*W"
    n_p = P // tp

    q_flat, sse = pl.pallas_call(
        _vq_kernel,
        out_shape=(
            jax.ShapeDtypeStruct((N, P, D), jnp.float32),
            jax.ShapeDtypeStruct((N, n_p, 1, 1), jnp.float32),
        ),
        grid_spec=pltpu.PrefetchScalarGridSpec(
            num_scalar_prefetch=0,
            grid=(N, n_p),
            in_specs=[
                pl.BlockSpec((1, tp, D), lambda n, p: (n, p, 0)),   # x rows
                pl.BlockSpec((1, M, D), lambda n, p: (n, 0, 0)),    # codebook
                pl.BlockSpec((1, D, M), lambda n, p: (n, 0, 0)),    # codebook^T
                pl.BlockSpec((1, 1, M), lambda n, p: (n, 0, 0)),    # ||e||^2
            ],
            out_specs=(
                pl.BlockSpec((1, tp, D), lambda n, p: (n, p, 0)),
                pl.BlockSpec((1, 1, 1, 1), lambda n, p: (n, p, 0, 0)),
            ),
        ),
        compiler_params=pltpu.CompilerParams(
            dimension_semantics=("parallel", "parallel")),
    )(x_flat, emb, emb_t, e_sq)

    e_latent_loss = jnp.sum(sse) / float(N * P * D)
    loss = commitment_cost * e_latent_loss

    # (N, P, D) -> (N, B, H, W, D) -> (B, N, D, H, W) -> (B, C, H, W)
    q = q_flat.reshape(N, B, H, W, D)
    q = jnp.transpose(q, (1, 0, 4, 2, 3)).reshape(B, C, H, W).astype(x.dtype)
    return loss, q


def vq_embedding_ema_reference(x, embedding, commitment_cost=0.25):
    """Pure-JAX mirror of the PyTorch eval-mode forward."""
    B, C, H, W = x.shape
    N, M, D = embedding.shape
    xp = jnp.transpose(x.reshape(B, N, D, H, W), (1, 0, 3, 4, 2))    # (N,B,H,W,D)
    x_flat = xp.reshape(N, -1, D)
    e_sq = jnp.sum(embedding ** 2, axis=2)[:, None, :]               # (N,1,M)
    x_sq = jnp.sum(x_flat ** 2, axis=2, keepdims=True)               # (N,P,1)
    distances = (e_sq + x_sq) - 2.0 * jnp.einsum("npd,nmd->npm", x_flat, embedding)
    indices = jnp.argmin(distances, axis=-1)                         # (N,P)
    gidx = jnp.broadcast_to(indices[..., None], indices.shape + (D,))
    quantized = jnp.take_along_axis(embedding, gidx, axis=1)         # (N,P,D)
    quantized = quantized.reshape(xp.shape)
    e_latent_loss = jnp.mean((xp - quantized) ** 2)
    loss = commitment_cost * e_latent_loss
    q_out = jnp.transpose(quantized, (1, 0, 4, 2, 3)).reshape(B, C, H, W)
    return loss, q_out


if __name__ == "__main__":
    latent_dim, num_embeddings, embedding_dim = 2, 256, 64
    B, H, W = 2, 16, 16
    C = latent_dim * embedding_dim                      # 128

    key = jax.random.PRNGKey(0)
    kx, ke = jax.random.split(key)
    x = jax.random.normal(kx, (B, C, H, W), jnp.float32)
    embedding = jax.random.uniform(
        ke, (latent_dim, num_embeddings, embedding_dim), jnp.float32,
        minval=-1.0 / num_embeddings, maxval=1.0 / num_embeddings)

    loss, quantized = jax.block_until_ready(vq_embedding_ema_forward(x, embedding))
    loss_ref, q_ref = jax.block_until_ready(vq_embedding_ema_reference(x, embedding))

    assert quantized.shape == (B, C, H, W) and quantized.dtype == jnp.float32
    assert jnp.allclose(quantized, q_ref, rtol=1e-5, atol=1e-5), (
        f"max abs err {jnp.max(jnp.abs(quantized - q_ref))}")
    assert jnp.allclose(loss, loss_ref, rtol=1e-4, atol=1e-6), (
        f"loss {loss} vs {loss_ref}")
    print("KERNEL_OK")
</pallas_src>

<mosaic_0001>
module attributes {stable_mosaic.version = 11 : i64} {
  func.func @_vq_kernel(%arg0: i32, %arg1: i32, %arg2: memref<1x256x64xf32, #tpu.memory_space<vmem>>, %arg3: memref<1x256x64xf32, #tpu.memory_space<vmem>>, %arg4: memref<1x64x256xf32, #tpu.memory_space<vmem>>, %arg5: memref<1x1x256xf32, #tpu.memory_space<vmem>>, %arg6: memref<1x256x64xf32, #tpu.memory_space<vmem>>, %arg7: memref<1x1x1x1xf32, #tpu.memory_space<vmem>>) attributes {dimension_semantics = [#tpu.dimension_semantics<parallel>, #tpu.dimension_semantics<parallel>], iteration_bounds = array<i64: 2, 2>, scalar_prefetch = 0 : i64, scratch_operands = 0 : i64, tpu.core_type = #tpu.core_type<tc>, window_params = [{transform_indices = @transform_0, window_bounds = array<i64: 1, 256, 64>}, {transform_indices = @transform_1, window_bounds = array<i64: 1, 256, 64>}, {transform_indices = @transform_2, window_bounds = array<i64: 1, 64, 256>}, {transform_indices = @transform_3, window_bounds = array<i64: 1, 1, 256>}, {transform_indices = @transform_4, window_bounds = array<i64: 1, 256, 64>}, {transform_indices = @transform_5, window_bounds = array<i64: 1, 1, 1, 1>}]} {
    %c0 = arith.constant 0 : index
    %c0_0 = arith.constant 0 : index
    %c0_1 = arith.constant 0 : index
    %0 = vector.load %arg2[%c0, %c0_0, %c0_1] : memref<1x256x64xf32, #tpu.memory_space<vmem>>, vector<1x256x64xf32>
    %1 = vector.shape_cast %0 : vector<1x256x64xf32> to vector<256x64xf32>
    %c0_2 = arith.constant 0 : index
    %c0_3 = arith.constant 0 : index
    %c0_4 = arith.constant 0 : index
    %2 = vector.load %arg3[%c0_2, %c0_3, %c0_4] : memref<1x256x64xf32, #tpu.memory_space<vmem>>, vector<1x256x64xf32>
    %3 = vector.shape_cast %2 : vector<1x256x64xf32> to vector<256x64xf32>
    %c0_5 = arith.constant 0 : index
    %c0_6 = arith.constant 0 : index
    %c0_7 = arith.constant 0 : index
    %4 = vector.load %arg4[%c0_5, %c0_6, %c0_7] : memref<1x64x256xf32, #tpu.memory_space<vmem>>, vector<1x64x256xf32>
    %5 = vector.shape_cast %4 : vector<1x64x256xf32> to vector<64x256xf32>
    %c0_8 = arith.constant 0 : index
    %c0_9 = arith.constant 0 : index
    %c0_10 = arith.constant 0 : index
    %6 = vector.load %arg5[%c0_8, %c0_9, %c0_10] : memref<1x1x256xf32, #tpu.memory_space<vmem>>, vector<1x1x256xf32>
    %7 = vector.shape_cast %6 : vector<1x1x256xf32> to vector<1x256xf32>
    %8 = arith.mulf %1, %1 : vector<256x64xf32>
    %cst = arith.constant dense<0.000000e+00> : vector<256xf32>
    %9 = vector.multi_reduction <add>, %8, %cst [1] : vector<256x64xf32> to vector<256xf32>
    %10 = vector.shape_cast %9 : vector<256xf32> to vector<256x1xf32>
    %cst_11 = arith.constant dense<0.000000e+00> : vector<256x256xf32>
    %11 = tpu.matmul %1, %5, %cst_11 {dimension_numbers = #tpu.dot_dimension_numbers<[1], [0], [0], [1], [0, 0, 1, 1], [], []>} : vector<256x64xf32>, vector<64x256xf32>, vector<256x256xf32> -> vector<256x256xf32>
    %12 = vector.broadcast %10 : vector<256x1xf32> to vector<256x256xf32>
    %13 = vector.broadcast %7 : vector<1x256xf32> to vector<256x256xf32>
    %14 = arith.addf %12, %13 : vector<256x256xf32>
    %cst_12 = arith.constant 2.000000e+00 : f32
    %15 = vector.broadcast %cst_12 : f32 to vector<256x256xf32>
    %16 = arith.mulf %15, %11 : vector<256x256xf32>
    %17 = arith.subf %14, %16 : vector<256x256xf32>
    %18 = tpu.iota {dimensions = array<i32: 1>} : vector<256x256xi32>
    %cst_13 = arith.constant dense<0x7F800000> : vector<256xf32>
    %19 = vector.multi_reduction <minimumf>, %17, %cst_13 [1] : vector<256x256xf32> to vector<256xf32>
    %20 = vector.shape_cast %19 : vector<256xf32> to vector<256x1xf32>
    %21 = vector.broadcast %20 : vector<256x1xf32> to vector<256x256xf32>
    %22 = arith.cmpf ole, %17, %21 : vector<256x256xf32>
    %c256_i32 = arith.constant 256 : i32
    %23 = vector.broadcast %c256_i32 : i32 to vector<256x256xi32>
    %24 = arith.select %22, %18, %23 : vector<256x256xi1>, vector<256x256xi32>
    %cst_14 = arith.constant dense<2147483647> : vector<256xi32>
    %25 = vector.multi_reduction <minsi>, %24, %cst_14 [1] : vector<256x256xi32> to vector<256xi32>
    %26 = vector.shape_cast %25 : vector<256xi32> to vector<256x1xi32>
    %27 = vector.broadcast %26 : vector<256x1xi32> to vector<256x256xi32>
    %28 = arith.cmpi eq, %18, %27 : vector<256x256xi32>
    %29 = arith.extui %28 : vector<256x256xi1> to vector<256x256xi32>
    %30 = arith.sitofp %29 : vector<256x256xi32> to vector<256x256xf32>
    %cst_15 = arith.constant dense<0.000000e+00> : vector<256x64xf32>
    %31 = tpu.matmul %30, %3, %cst_15 {dimension_numbers = #tpu.dot_dimension_numbers<[1], [0], [0], [1], [0, 0, 1, 1], [], []>} : vector<256x256xf32>, vector<256x64xf32>, vector<256x64xf32> -> vector<256x64xf32>
    %c0_16 = arith.constant 0 : index
    %c0_17 = arith.constant 0 : index
    %c0_18 = arith.constant 0 : index
    %32 = vector.load %arg6[%c0_16, %c0_17, %c0_18] : memref<1x256x64xf32, #tpu.memory_space<vmem>>, vector<1x256x64xf32>
    %33 = vector.shape_cast %32 : vector<1x256x64xf32> to vector<256x64xf32>
    %34 = vector.shape_cast %31 : vector<256x64xf32> to vector<1x256x64xf32>
    tpu.vector_store %arg6[%c0_16, %c0_17, %c0_18], %34 {strides = array<i32>} : memref<1x256x64xf32, #tpu.memory_space<vmem>>, vector<1x256x64xf32>,
    %35 = arith.subf %1, %31 : vector<256x64xf32>
    %36 = arith.mulf %35, %35 : vector<256x64xf32>
    %cst_19 = arith.constant dense<0.000000e+00> : vector<256xf32>
    %37 = vector.multi_reduction <add>, %36, %cst_19 [1] : vector<256x64xf32> to vector<256xf32>
    %38 = vector.shape_cast %37 : vector<256xf32> to vector<256x1xf32>
    %cst_20 = arith.constant dense<0.000000e+00> : vector<1xf32>
    %39 = vector.multi_reduction <add>, %38, %cst_20 [0] : vector<256x1xf32> to vector<1xf32>
    %40 = vector.shape_cast %39 : vector<1xf32> to vector<1x1xf32>
    %c0_21 = arith.constant 0 : index
    %c0_22 = arith.constant 0 : index
    %c0_23 = arith.constant 0 : index
    %c0_24 = arith.constant 0 : index
    %41 = vector.load %arg7[%c0_21, %c0_22, %c0_23, %c0_24] : memref<1x1x1x1xf32, #tpu.memory_space<vmem>>, vector<1x1x1x1xf32>
    %42 = vector.shape_cast %41 : vector<1x1x1x1xf32> to vector<1x1xf32>
    %43 = vector.shape_cast %40 : vector<1x1xf32> to vector<1x1x1x1xf32>
    tpu.vector_store %arg7[%c0_21, %c0_22, %c0_23, %c0_24], %43 {strides = array<i32>} : memref<1x1x1x1xf32, #tpu.memory_space<vmem>>, vector<1x1x1x1xf32>,
    return
  }
  func.func @transform_0(%arg0: i32, %arg1: i32) -> (i32, i32, i32) {
    %c0_i32 = arith.constant 0 : i32
    %c0_i32_0 = arith.constant 0 : i32
    return %arg0, %arg1, %c0_i32 : i32, i32, i32
  }
  func.func @transform_1(%arg0: i32, %arg1: i32) -> (i32, i32, i32) {
    %c0_i32 = arith.constant 0 : i32
    %c0_i32_0 = arith.constant 0 : i32
    %c0_i32_1 = arith.constant 0 : i32
    return %arg0, %c0_i32, %c0_i32_0 : i32, i32, i32
  }
  func.func @transform_2(%arg0: i32, %arg1: i32) -> (i32, i32, i32) {
    %c0_i32 = arith.constant 0 : i32
    %c0_i32_0 = arith.constant 0 : i32
    %c0_i32_1 = arith.constant 0 : i32
    return %arg0, %c0_i32, %c0_i32_0 : i32, i32, i32
  }
  func.func @transform_3(%arg0: i32, %arg1: i32) -> (i32, i32, i32) {
    %c0_i32 = arith.constant 0 : i32
    %c0_i32_0 = arith.constant 0 : i32
    %c0_i32_1 = arith.constant 0 : i32
    return %arg0, %c0_i32, %c0_i32_0 : i32, i32, i32
  }
  func.func @transform_4(%arg0: i32, %arg1: i32) -> (i32, i32, i32) {
    %c0_i32 = arith.constant 0 : i32
    %c0_i32_0 = arith.constant 0 : i32
    return %arg0, %arg1, %c0_i32 : i32, i32, i32
  }
  func.func @transform_5(%arg0: i32, %arg1: i32) -> (i32, i32, i32, i32) {
    %c0_i32 = arith.constant 0 : i32
    %c0_i32_0 = arith.constant 0 : i32
    %c0_i32_1 = arith.constant 0 : i32
    return %arg0, %arg1, %c0_i32, %c0_i32_0 : i32, i32, i32, i32
  }
}

</mosaic_0001>

<llo_original>
// kernel: tpu_custom_call.1
$region0: #{tpu_custom_call.1}
  #allocation0 [shape = 'u32[]', space=smem, size = 0x4, offset = 0x4, fixed_abs, tag = 'smem constant byte address 0x4 - core index']
  #allocation1 [shape = 'u32[72,128]{1,0:T(1,128)}', space=vmem, size = 0x9000, scoped, tag = 'internal scratch']
  %s0 = inlined_call_operand.vmem [shape: f32[2,512,64], index: 0, kind: input, shape index: {}]
  %s1 = inlined_call_operand.vmem [shape: f32[2,256,64], index: 1, kind: input, shape index: {}]
  %s2 = inlined_call_operand.vmem [shape: f32[2,64,256], index: 2, kind: input, shape index: {}]
  %s3 = inlined_call_operand.vmem [shape: f32[2,1,256], index: 3, kind: input, shape index: {}]
  %s4 = inlined_call_operand.vmem [shape: f32[2,512,64], index: 4, kind: output, shape index: {0}]
  %s5 = inlined_call_operand.vmem [shape: f32[2,2,1,1], index: 5, kind: output, shape index: {1}]
  %6 = xla_tuple %s4, %s5
  %s7 = sld [smem:[#allocation0]]
  $region57: #{tpu_custom_call.1} parent=0
    _
  %s9 = ssub.s32 1, %s7
  %s10 = scalar_select 0, %s9, %s7
  loop: start=0, step=1, limit=6
  $region2: #{tpu_custom_call.1} parent=0 // loop_pre_header
    _
  $region3: #{tpu_custom_call.1} parent=0 // loop_header
    %s12 = sphi 0, %s16
    %p13 = scmp.ge.s32.totalorder %s12, 6
    %s19 = sphi 0, %s31
    %s20 = sphi 0, %s27
    %s21 = sphi 0, %s19
    %s22 = sphi 0, %s20
    %s23 = sphi 0, %s21
    %s24 = sphi 0, %s22
    %s36 = sphi 0, %s38
    %s39 = sphi 0, %s36
    %s40 = sphi 0, %s39
    %s56 = sphi 0, %s40
    %s62 = sphi 0, %s64
    %s65 = sphi 0, %s62
    %s66 = sphi 0, %s65
    %s82 = sphi 0, %s66
    %s88 = sphi 0, %s90
    %s91 = sphi 0, %s88
    %s92 = sphi 0, %s91
    %s108 = sphi 0, %s92
    %s114 = sphi 0, %s116
    %s117 = sphi 0, %s114
    %s118 = sphi 0, %s117
    %s134 = sphi 0, %s118
    %s142 = sphi 0, %s144
    %s145 = sphi 0, %s142
    %s146 = sphi 0, %s145
    %s162 = sphi 0, %s146
    %s170 = sphi 0, %s172
    %s173 = sphi 0, %s170
    %s174 = sphi 0, %s173
    %s190 = sphi 0, %s174
  $region4: #{tpu_custom_call.1} parent=0 // loop_header_branch
    %15 = sbr.rel (%p13) target = $region8
  $region5: #{tpu_custom_call.1} parent=0 // loop_body
    %s17 = ssub.s32 %s12, 1
    %s18 = ssub.s32 %s12, 2
    %s25 = sadd.s32 1, %s20
    %p26 = scmp.ge.s32.totalorder %s25, 2
    %s27 = scalar_select %p26, 0, %s25
    %s28 = sadd.s32 1, %s19
    %s29 = scalar_select %p26, %s28, %s19
    %p30 = scmp.ge.s32.totalorder %s29, 2
    %s31 = scalar_select %p30, 0, %s29
    %s32 = ssub.s32 %s19, %s31
    %s33 = ssub.s32 %s20, %s27
    %s34 = sor.u32 %s32, %s33
    %p35 = scmp.eq.s32.totalorder %s34, 0
    %s37 = sadd.s32 %s36, 1
    %s38 = scalar_select %p35, %s36, %s37
    %p41 = pneg %p35
    %p42 = scmp.eq.s32.totalorder %s12, 3
    %p43 = por %p41, %p42
    %p44 = scmp.ne.s32.totalorder %s36, %s39
    %p45 = scmp.eq.s32.totalorder %s12, 0
    %p46 = por %p44, %p45
    %p47 = scmp.ne.s32.totalorder %s36, %s39
    %p48 = scmp.eq.s32.totalorder %s17, 3
    %p49 = por %p47, %p48
    %p50 = scmp.ne.s32.totalorder %s39, %s40
    %p51 = scmp.eq.s32.totalorder %s17, 0
    %p52 = por %p50, %p51
    %p53 = scmp.ne.s32.totalorder %s39, %s40
    %p54 = scmp.eq.s32.totalorder %s18, 3
    %p55 = por %p53, %p54
    %p57 = scmp.ne.s32.totalorder %s40, %s56
    %p58 = scmp.eq.s32.totalorder %s18, 0
    %p59 = por %p57, %p58
    %s60 = ssub.s32 %s19, %s31
    %p61 = scmp.eq.s32.totalorder %s60, 0
    %s63 = sadd.s32 %s62, 1
    %s64 = scalar_select %p61, %s62, %s63
    %p67 = pneg %p61
    %p68 = scmp.eq.s32.totalorder %s12, 3
    %p69 = por %p67, %p68
    %p70 = scmp.ne.s32.totalorder %s62, %s65
    %p71 = scmp.eq.s32.totalorder %s12, 0
    %p72 = por %p70, %p71
    %p73 = scmp.ne.s32.totalorder %s62, %s65
    %p74 = scmp.eq.s32.totalorder %s17, 3
    %p75 = por %p73, %p74
    %p76 = scmp.ne.s32.totalorder %s65, %s66
    %p77 = scmp.eq.s32.totalorder %s17, 0
    %p78 = por %p76, %p77
    %p79 = scmp.ne.s32.totalorder %s65, %s66
    %p80 = scmp.eq.s32.totalorder %s18, 3
    %p81 = por %p79, %p80
    %p83 = scmp.ne.s32.totalorder %s66, %s82
    %p84 = scmp.eq.s32.totalorder %s18, 0
    %p85 = por %p83, %p84
    %s86 = ssub.s32 %s19, %s31
    %p87 = scmp.eq.s32.totalorder %s86, 0
    %s89 = sadd.s32 %s88, 1
    %s90 = scalar_select %p87, %s88, %s89
    %p93 = pneg %p87
    %p94 = scmp.eq.s32.totalorder %s12, 3
    %p95 = por %p93, %p94
    %p96 = scmp.ne.s32.totalorder %s88, %s91
    %p97 = scmp.eq.s32.totalorder %s12, 0
    %p98 = por %p96, %p97
    %p99 = scmp.ne.s32.totalorder %s88, %s91
    %p100 = scmp.eq.s32.totalorder %s17, 3
    %p101 = por %p99, %p100
    %p102 = scmp.ne.s32.totalorder %s91, %s92
    %p103 = scmp.eq.s32.totalorder %s17, 0
    %p104 = por %p102, %p103
    %p105 = scmp.ne.s32.totalorder %s91, %s92
    %p106 = scmp.eq.s32.totalorder %s18, 3
    %p107 = por %p105, %p106
    %p109 = scmp.ne.s32.totalorder %s92, %s108
    %p110 = scmp.eq.s32.totalorder %s18, 0
    %p111 = por %p109, %p110
    %s112 = ssub.s32 %s19, %s31
    %p113 = scmp.eq.s32.totalorder %s112, 0
    %s115 = sadd.s32 %s114, 1
    %s116 = scalar_select %p113, %s114, %s115
    %p119 = pneg %p113
    %p120 = scmp.eq.s32.totalorder %s12, 3
    %p121 = por %p119, %p120
    %p122 = scmp.ne.s32.totalorder %s114, %s117
    %p123 = scmp.eq.s32.totalorder %s12, 0
    %p124 = por %p122, %p123
    %p125 = scmp.ne.s32.totalorder %s114, %s117
    %p126 = scmp.eq.s32.totalorder %s17, 3
    %p127 = por %p125, %p126
    %p128 = scmp.ne.s32.totalorder %s117, %s118
    %p129 = scmp.eq.s32.totalorder %s17, 0
    %p130 = por %p128, %p129
    %p131 = scmp.ne.s32.totalorder %s117, %s118
    %p132 = scmp.eq.s32.totalorder %s18, 3
    %p133 = por %p131, %p132
    %p135 = scmp.ne.s32.totalorder %s118, %s134
    %p136 = scmp.eq.s32.totalorder %s18, 0
    %p137 = por %p135, %p136
    %s138 = ssub.s32 %s19, %s31
    %s139 = ssub.s32 %s20, %s27
    %s140 = sor.u32 %s138, %s139
    %p141 = scmp.eq.s32.totalorder %s140, 0
    %s143 = sadd.s32 %s142, 1
    %s144 = scalar_select %p141, %s142, %s143
    %p147 = pneg %p141
    %p148 = scmp.eq.s32.totalorder %s12, 3
    %p149 = por %p147, %p148
    %p150 = scmp.ne.s32.totalorder %s142, %s145
    %p151 = scmp.eq.s32.totalorder %s12, 0
    %p152 = por %p150, %p151
    %p153 = scmp.ne.s32.totalorder %s142, %s145
    %p154 = scmp.eq.s32.totalorder %s17, 3
    %p155 = por %p153, %p154
    %p156 = scmp.ne.s32.totalorder %s145, %s146
    %p157 = scmp.eq.s32.totalorder %s17, 0
    %p158 = por %p156, %p157
    %p159 = scmp.ne.s32.totalorder %s145, %s146
    %p160 = scmp.eq.s32.totalorder %s18, 3
    %p161 = por %p159, %p160
    %p163 = scmp.ne.s32.totalorder %s146, %s162
    %p164 = scmp.eq.s32.totalorder %s18, 0
    %p165 = por %p163, %p164
    %s166 = ssub.s32 %s19, %s31
    %s167 = ssub.s32 %s20, %s27
    %s168 = sor.u32 %s166, %s167
    %p169 = scmp.eq.s32.totalorder %s168, 0
    %s171 = sadd.s32 %s170, 1
    %s172 = scalar_select %p169, %s170, %s171
    %p175 = pneg %p169
    %p176 = scmp.eq.s32.totalorder %s12, 3
    %p177 = por %p175, %p176
    %p178 = scmp.ne.s32.totalorder %s170, %s173
    %p179 = scmp.eq.s32.totalorder %s12, 0
    %p180 = por %p178, %p179
    %p181 = scmp.ne.s32.totalorder %s170, %s173
    %p182 = scmp.eq.s32.totalorder %s17, 3
    %p183 = por %p181, %p182
    %p184 = scmp.ne.s32.totalorder %s173, %s174
    %p185 = scmp.eq.s32.totalorder %s17, 0
    %p186 = por %p184, %p185
    %p187 = scmp.ne.s32.totalorder %s173, %s174
    %p188 = scmp.eq.s32.totalorder %s18, 3
    %p189 = por %p187, %p188
    %p191 = scmp.ne.s32.totalorder %s174, %s190
    %p192 = scmp.eq.s32.totalorder %s18, 0
    %p193 = por %p191, %p192
    %p194 = scmp.le.s32.totalorder 1, %s12
    %p195 = scmp.lt.s32.totalorder %s12, 5
    %p196 = pnand %p194, %p195
    %p197 = pneg %p196
    // Predicated region
    $region9: #{tpu_custom_call.1} parent=5 // pred_check
      _
    $region10: #{tpu_custom_call.1} parent=5 // pred_check_branch
      %199 = sbr.rel (%p196) target = $region12
    $region11: #{tpu_custom_call.1} parent=5 // pred_region
      %s200 = ssub.s32 %s12, 1
    $region12: #{tpu_custom_call.1} parent=5 // pred_fallthru
      _
    %p201 = scmp.lt.s32.totalorder %s12, 4
    // Predicated region
    $region13: #{tpu_custom_call.1} parent=5 // pred_check
      %p202 = pneg %p201
    $region14: #{tpu_custom_call.1} parent=5 // pred_check_branch
      %204 = sbr.rel (%p202) target = $region16
    $region15: #{tpu_custom_call.1} parent=5 // pred_region
      // Predicated region
      $region17: #{tpu_custom_call.1} parent=15 // pred_check
        %p205 = pneg %p46
      $region18: #{tpu_custom_call.1} parent=15 // pred_check_branch
        %207 = sbr.rel (%p205) target = $region20
      $region19: #{tpu_custom_call.1} parent=15 // pred_region
        %s208 = smul.u32 32, %s20
        %p209 = scmp.lt.s32.totalorder %s19, 1
        %s210 = scalar_select %p209, %s19, 1
        %p211 = scmp.lt.s32.totalorder %s208, 63
        %s212 = scalar_select %p211, %s208, 63
        %s213 = smul.addr %s210, 64
        %s214 = sadd.s32 %s212, %s213
        %s215 = smul.addr %s214, 8
        %s216 = scalar_lea.vmem %s0, %s215
        %s217 = smul.u32 32, %s20
      $region20: #{tpu_custom_call.1} parent=15 // pred_fallthru
        _
      // Predicated region
      $region21: #{tpu_custom_call.1} parent=15 // pred_check
        %p218 = pneg %p72
      $region22: #{tpu_custom_call.1} parent=15 // pred_check_branch
        %220 = sbr.rel (%p218) target = $region24
      $region23: #{tpu_custom_call.1} parent=15 // pred_region
        %p221 = scmp.lt.s32.totalorder %s19, 1
        %s222 = scalar_select %p221, %s19, 1
        %s223 = smul.addr %s222, 32
        %s224 = smul.addr %s223, 8
        %s225 = scalar_lea.vmem %s1, %s224
      $region24: #{tpu_custom_call.1} parent=15 // pred_fallthru
        _
      // Predicated region
      $region25: #{tpu_custom_call.1} parent=15 // pred_check
        %p226 = pneg %p98
      $region26: #{tpu_custom_call.1} parent=15 // pred_check_branch
        %228 = sbr.rel (%p226) target = $region28
      $region27: #{tpu_custom_call.1} parent=15 // pred_region
        %p229 = scmp.lt.s32.totalorder %s19, 1
        %s230 = scalar_select %p229, %s19, 1
        %s231 = smul.addr %s230, 16
        %s232 = smul.addr %s231, 8
        %s233 = scalar_lea.vmem %s2, %s232
      $region28: #{tpu_custom_call.1} parent=15 // pred_fallthru
        _
      // Predicated region
      $region29: #{tpu_custom_call.1} parent=15 // pred_check
        %p234 = pneg %p124
      $region30: #{tpu_custom_call.1} parent=15 // pred_check_branch
        %236 = sbr.rel (%p234) target = $region32
      $region31: #{tpu_custom_call.1} parent=15 // pred_region
        %p237 = scmp.lt.s32.totalorder %s19, 1
        %s238 = scalar_select %p237, %s19, 1
        %s239 = smul.addr %s238, 2
        %s240 = scalar_lea.vmem %s3, %s239
      $region32: #{tpu_custom_call.1} parent=15 // pred_fallthru
        _
    $region16: #{tpu_custom_call.1} parent=5 // pred_fallthru
      _
    %p241 = scmp.le.s32.totalorder 1, %s12
    %p242 = scmp.lt.s32.totalorder %s12, 5
    %p243 = pnand %p241, %p242
    %p244 = pneg %p243
    // Predicated region
    $region33: #{tpu_custom_call.1} parent=5 // pred_check
      _
    $region34: #{tpu_custom_call.1} parent=5 // pred_check_branch
      %246 = sbr.rel (%p243) target = $region36
    $region35: #{tpu_custom_call.1} parent=5 // pred_region
      %s247 = ssub.s32 %s12, 1
      %s248 = smul.u32 32, %s22
      %p249 = scmp.lt.s32.totalorder %s21, 1
      %s250 = scalar_select %p249, %s21, 1
      %p251 = scmp.lt.s32.totalorder %s248, 63
      %s252 = scalar_select %p251, %s248, 63
      %s253 = smul.addr %s250, 64
      %s254 = sadd.s32 %s252, %s253
      %s255 = smul.addr %s254, 8
      %s256 = scalar_lea.vmem %s0, %s255
      %p257 = pneg %p52
      %p258 = pneg %p49
      %p259 = scmp.lt.s32.totalorder %s21, 1
      %s260 = scalar_select %p259, %s21, 1
      %s261 = smul.addr %s260, 32
      %s262 = smul.addr %s261, 8
      %s263 = scalar_lea.vmem %s1, %s262
      %p264 = pneg %p78
      %p265 = pneg %p75
      %p266 = scmp.lt.s32.totalorder %s21, 1
      %s267 = scalar_select %p266, %s21, 1
      %s268 = smul.addr %s267, 16
      %s269 = smul.addr %s268, 8
      %s270 = scalar_lea.vmem %s2, %s269
      %p271 = pneg %p104
      %p272 = pneg %p101
      %p273 = scmp.lt.s32.totalorder %s21, 1
      %s274 = scalar_select %p273, %s21, 1
      %s275 = smul.addr %s274, 2
      %s276 = scalar_lea.vmem %s3, %s275
      %p277 = pneg %p130
      %p278 = pneg %p127
      %p279 = pneg %p158
      %p280 = pneg %p155
      %s281 = smul.u32 32, %s22
      %p282 = scmp.lt.s32.totalorder %s21, 1
      %s283 = scalar_select %p282, %s21, 1
      %p284 = scmp.lt.s32.totalorder %s281, 63
      %s285 = scalar_select %p284, %s281, 63
      %s286 = smul.addr %s283, 64
      %s287 = sadd.s32 %s285, %s286
      %s288 = smul.addr %s287, 8
      %s289 = scalar_lea.vmem %s4, %s288
      %p290 = pneg %p186
      %p291 = pneg %p183
      %p292 = scmp.lt.s32.totalorder %s21, 1
      %s293 = scalar_select %p292, %s21, 1
      %p294 = scmp.lt.s32.totalorder %s22, 1
      %s295 = scalar_select %p294, %s22, 1
      %s296 = smul.addr %s293, 2
      %s297 = sadd.s32 %s295, %s296
      %s298 = scalar_lea.vmem %s5, %s297
      %s299 = smul.u32 32, %s22
      %p300 = scmp.lt.s32.totalorder %s21, 1
      %s301 = scalar_select %p300, %s21, 1
      %p302 = scmp.lt.s32.totalorder %s299, 63
      %s303 = scalar_select %p302, %s299, 63
      %s304 = smul.addr %s301, 64
      %s305 = sadd.s32 %s303, %s304
      %s306 = smul.addr %s305, 8
      %s307 = scalar_lea.vmem %s0, %s306
      %s308 = smul.u32 32, %s22
      %p309 = scmp.lt.s32.totalorder %s21, 1
      %s310 = scalar_select %p309, %s21, 1
      %s311 = smul.addr %s310, 32
      %s312 = smul.addr %s311, 8
      %s313 = scalar_lea.vmem %s1, %s312
      %p314 = scmp.lt.s32.totalorder %s21, 1
      %s315 = scalar_select %p314, %s21, 1
      %s316 = smul.addr %s315, 16
      %s317 = smul.addr %s316, 8
      %s318 = scalar_lea.vmem %s2, %s317
      %p319 = scmp.lt.s32.totalorder %s21, 1
      %s320 = scalar_select %p319, %s21, 1
      %s321 = smul.addr %s320, 2
      %s322 = scalar_lea.vmem %s3, %s321
      %s323 = smul.u32 32, %s22
      %p324 = scmp.lt.s32.totalorder %s21, 1
      %s325 = scalar_select %p324, %s21, 1
      %p326 = scmp.lt.s32.totalorder %s323, 63
      %s327 = scalar_select %p326, %s323, 63
      %s328 = smul.addr %s325, 64
      %s329 = sadd.s32 %s327, %s328
      %s330 = smul.addr %s329, 8
      %s331 = scalar_lea.vmem %s4, %s330
      %s332 = smul.u32 32, %s22
      %p333 = scmp.lt.s32.totalorder %s21, 1
      %s334 = scalar_select %p333, %s21, 1
      %p335 = scmp.lt.s32.totalorder %s22, 1
      %s336 = scalar_select %p335, %s22, 1
      %s337 = smul.addr %s334, 2
      %s338 = sadd.s32 %s336, %s337
      %s339 = scalar_lea.vmem %s5, %s338
      %v340 = vld [vmem:[%s307] sm:$0xff]
      %v341 = vld [vmem:[%s307 + $0x8] sm:$0xff]
      %v342 = vld [vmem:[%s307 + $0x10] sm:$0xff]
      %v343 = vld [vmem:[%s307 + $0x18] sm:$0xff]
      %v344 = vld [vmem:[%s307 + $0x20] sm:$0xff]
      %v345 = vld [vmem:[%s307 + $0x28] sm:$0xff]
      %v346 = vld [vmem:[%s307 + $0x30] sm:$0xff]
      %v347 = vld [vmem:[%s307 + $0x38] sm:$0xff]
      %v348 = vld [vmem:[%s307 + $0x40] sm:$0xff]
      %v349 = vld [vmem:[%s307 + $0x48] sm:$0xff]
      %v350 = vld [vmem:[%s307 + $0x50] sm:$0xff]
      %v351 = vld [vmem:[%s307 + $0x58] sm:$0xff]
      %v352 = vld [vmem:[%s307 + $0x60] sm:$0xff]
      %v353 = vld [vmem:[%s307 + $0x68] sm:$0xff]
      %v354 = vld [vmem:[%s307 + $0x70] sm:$0xff]
      %v355 = vld [vmem:[%s307 + $0x78] sm:$0xff]
      %v356 = vld [vmem:[%s307 + $0x80] sm:$0xff]
      %v357 = vld [vmem:[%s307 + $0x88] sm:$0xff]
      %v358 = vld [vmem:[%s307 + $0x90] sm:$0xff]
      %v359 = vld [vmem:[%s307 + $0x98] sm:$0xff]
      %v360 = vld [vmem:[%s307 + $0xa0] sm:$0xff]
      %v361 = vld [vmem:[%s307 + $0xa8] sm:$0xff]
      %v362 = vld [vmem:[%s307 + $0xb0] sm:$0xff]
      %v363 = vld [vmem:[%s307 + $0xb8] sm:$0xff]
      %v364 = vld [vmem:[%s307 + $0xc0] sm:$0xff]
      %v365 = vld [vmem:[%s307 + $0xc8] sm:$0xff]
      %v366 = vld [vmem:[%s307 + $0xd0] sm:$0xff]
      %v367 = vld [vmem:[%s307 + $0xd8] sm:$0xff]
      %v368 = vld [vmem:[%s307 + $0xe0] sm:$0xff]
      %v369 = vld [vmem:[%s307 + $0xe8] sm:$0xff]
      %v370 = vld [vmem:[%s307 + $0xf0] sm:$0xff]
      %v371 = vld [vmem:[%s307 + $0xf8] sm:$0xff]
      %v372 = vld [vmem:[%s313] sm:$0xff]
      %v373 = vld [vmem:[%s313 + $0x8] sm:$0xff]
      %v374 = vld [vmem:[%s313 + $0x10] sm:$0xff]
      %v375 = vld [vmem:[%s313 + $0x18] sm:$0xff]
      %v376 = vld [vmem:[%s313 + $0x20] sm:$0xff]
      %v377 = vld [vmem:[%s313 + $0x28] sm:$0xff]
      %v378 = vld [vmem:[%s313 + $0x30] sm:$0xff]
      %v379 = vld [vmem:[%s313 + $0x38] sm:$0xff]
      %v380 = vld [vmem:[%s313 + $0x40] sm:$0xff]
      %v381 = vld [vmem:[%s313 + $0x48] sm:$0xff]
      %v382 = vld [vmem:[%s313 + $0x50] sm:$0xff]
      %v383 = vld [vmem:[%s313 + $0x58] sm:$0xff]
      %v384 = vld [vmem:[%s313 + $0x60] sm:$0xff]
      %v385 = vld [vmem:[%s313 + $0x68] sm:$0xff]
      %v386 = vld [vmem:[%s313 + $0x70] sm:$0xff]
      %v387 = vld [vmem:[%s313 + $0x78] sm:$0xff]
      %v388 = vld [vmem:[%s313 + $0x80] sm:$0xff]
      %v389 = vld [vmem:[%s313 + $0x88] sm:$0xff]
      %v390 = vld [vmem:[%s313 + $0x90] sm:$0xff]
      %v391 = vld [vmem:[%s313 + $0x98] sm:$0xff]
      %v392 = vld [vmem:[%s313 + $0xa0] sm:$0xff]
      %v393 = vld [vmem:[%s313 + $0xa8] sm:$0xff]
      %v394 = vld [vmem:[%s313 + $0xb0] sm:$0xff]
      %v395 = vld [vmem:[%s313 + $0xb8] sm:$0xff]
      %v396 = vld [vmem:[%s313 + $0xc0] sm:$0xff]
      %v397 = vld [vmem:[%s313 + $0xc8] sm:$0xff]
      %v398 = vld [vmem:[%s313 + $0xd0] sm:$0xff]
      %v399 = vld [vmem:[%s313 + $0xd8] sm:$0xff]
      %v400 = vld [vmem:[%s313 + $0xe0] sm:$0xff]
      %v401 = vld [vmem:[%s313 + $0xe8] sm:$0xff]
      %v402 = vld [vmem:[%s313 + $0xf0] sm:$0xff]
      %v403 = vld [vmem:[%s313 + $0xf8] sm:$0xff]
      %v404 = vld [vmem:[%s318] sm:$0xff]
      %v405 = vld [vmem:[%s318 + $0x8] sm:$0xff]
      %v406 = vld [vmem:[%s318 + $0x10] sm:$0xff]
      %v407 = vld [vmem:[%s318 + $0x18] sm:$0xff]
      %v408 = vld [vmem:[%s318 + $0x20] sm:$0xff]
      %v409 = vld [vmem:[%s318 + $0x28] sm:$0xff]
      %v410 = vld [vmem:[%s318 + $0x30] sm:$0xff]
      %v411 = vld [vmem:[%s318 + $0x38] sm:$0xff]
      %v412 = vld [vmem:[%s318 + $0x40] sm:$0xff]
      %v413 = vld [vmem:[%s318 + $0x48] sm:$0xff]
      %v414 = vld [vmem:[%s318 + $0x50] sm:$0xff]
      %v415 = vld [vmem:[%s318 + $0x58] sm:$0xff]
      %v416 = vld [vmem:[%s318 + $0x60] sm:$0xff]
      %v417 = vld [vmem:[%s318 + $0x68] sm:$0xff]
      %v418 = vld [vmem:[%s318 + $0x70] sm:$0xff]
      %v419 = vld [vmem:[%s318 + $0x78] sm:$0xff]
      %v420 = vld [vmem:[%s322] sm:$0x3]
      %v421 = vmul.f32 %v340, %v340
      %v422 = vmul.f32 %v341, %v341
      %v423 = vmul.f32 %v342, %v342
      %v424 = vmul.f32 %v343, %v343
      %v425 = vmul.f32 %v344, %v344
      %v426 = vmul.f32 %v345, %v345
      %v427 = vmul.f32 %v346, %v346
      %v428 = vmul.f32 %v347, %v347
      %v429 = vmul.f32 %v348, %v348
      %v430 = vmul.f32 %v349, %v349
      %v431 = vmul.f32 %v350, %v350
      %v432 = vmul.f32 %v351, %v351
      %v433 = vmul.f32 %v352, %v352
      %v434 = vmul.f32 %v353, %v353
      %v435 = vmul.f32 %v354, %v354
      %v436 = vmul.f32 %v355, %v355
      %v437 = vmul.f32 %v356, %v356
      %v438 = vmul.f32 %v357, %v357
      %v439 = vmul.f32 %v358, %v358
      %v440 = vmul.f32 %v359, %v359
      %v441 = vmul.f32 %v360, %v360
      %v442 = vmul.f32 %v361, %v361
      %v443 = vmul.f32 %v362, %v362
      %v444 = vmul.f32 %v363, %v363
      %v445 = vmul.f32 %v364, %v364
      %v446 = vmul.f32 %v365, %v365
      %v447 = vmul.f32 %v366, %v366
      %v448 = vmul.f32 %v367, %v367
      %v449 = vmul.f32 %v368, %v368
      %v450 = vmul.f32 %v369, %v369
      %v451 = vmul.f32 %v370, %v370
      %v452 = vmul.f32 %v371, %v371
      %vm453 = vcmask 523264
      %v454 = vsel %vm453, %v421, 0.0
      %455 = vadd.xlane.f32.xlu0 %v454
      %v456 = vpop.xlane.xlu0 %455
      %v457 = vsel %vm453, %v422, 0.0
      %458 = vadd.xlane.f32.xlu0 %v457
      %v459 = vpop.xlane.xlu0 %458
      %v460 = vsel %vm453, %v423, 0.0
      %461 = vadd.xlane.f32.xlu0 %v460
      %v462 = vpop.xlane.xlu0 %461
      %v463 = vsel %vm453, %v424, 0.0
      %464 = vadd.xlane.f32.xlu0 %v463
      %v465 = vpop.xlane.xlu0 %464
      %v466 = vsel %vm453, %v425, 0.0
      %467 = vadd.xlane.f32.xlu0 %v466
      %v468 = vpop.xlane.xlu0 %467
      %v469 = vsel %vm453, %v426, 0.0
      %470 = vadd.xlane.f32.xlu0 %v469
      %v471 = vpop.xlane.xlu0 %470
      %v472 = vsel %vm453, %v427, 0.0
      %473 = vadd.xlane.f32.xlu0 %v472
      %v474 = vpop.xlane.xlu0 %473
      %v475 = vsel %vm453, %v428, 0.0
      %476 = vadd.xlane.f32.xlu0 %v475
      %v477 = vpop.xlane.xlu0 %476
      %v478 = vsel %vm453, %v429, 0.0
      %479 = vadd.xlane.f32.xlu0 %v478
      %v480 = vpop.xlane.xlu0 %479
      %v481 = vsel %vm453, %v430, 0.0
      %482 = vadd.xlane.f32.xlu0 %v481
      %v483 = vpop.xlane.xlu0 %482
      %v484 = vsel %vm453, %v431, 0.0
      %485 = vadd.xlane.f32.xlu0 %v484
      %v486 = vpop.xlane.xlu0 %485
      %v487 = vsel %vm453, %v432, 0.0
      %488 = vadd.xlane.f32.xlu0 %v487
      %v489 = vpop.xlane.xlu0 %488
      %v490 = vsel %vm453, %v433, 0.0
      %491 = vadd.xlane.f32.xlu0 %v490
      %v492 = vpop.xlane.xlu0 %491
      %v493 = vsel %vm453, %v434, 0.0
      %494 = vadd.xlane.f32.xlu0 %v493
      %v495 = vpop.xlane.xlu0 %494
      %v496 = vsel %vm453, %v435, 0.0
      %497 = vadd.xlane.f32.xlu0 %v496
      %v498 = vpop.xlane.xlu0 %497
      %v499 = vsel %vm453, %v436, 0.0
      %500 = vadd.xlane.f32.xlu0 %v499
      %v501 = vpop.xlane.xlu0 %500
      %v502 = vsel %vm453, %v437, 0.0
      %503 = vadd.xlane.f32.xlu0 %v502
      %v504 = vpop.xlane.xlu0 %503
      %v505 = vsel %vm453, %v438, 0.0
      %506 = vadd.xlane.f32.xlu0 %v505
      %v507 = vpop.xlane.xlu0 %506
      %v508 = vsel %vm453, %v439, 0.0
      %509 = vadd.xlane.f32.xlu0 %v508
      %v510 = vpop.xlane.xlu0 %509
      %v511 = vsel %vm453, %v440, 0.0
      %512 = vadd.xlane.f32.xlu0 %v511
      %v513 = vpop.xlane.xlu0 %512
      %v514 = vsel %vm453, %v441, 0.0
      %515 = vadd.xlane.f32.xlu0 %v514
      %v516 = vpop.xlane.xlu0 %515
      %v517 = vsel %vm453, %v442, 0.0
      %518 = vadd.xlane.f32.xlu0 %v517
      %v519 = vpop.xlane.xlu0 %518
      %v520 = vsel %vm453, %v443, 0.0
      %521 = vadd.xlane.f32.xlu0 %v520
      %v522 = vpop.xlane.xlu0 %521
      %v523 = vsel %vm453, %v444, 0.0
      %524 = vadd.xlane.f32.xlu0 %v523
      %v525 = vpop.xlane.xlu0 %524
      %v526 = vsel %vm453, %v445, 0.0
      %527 = vadd.xlane.f32.xlu0 %v526
      %v528 = vpop.xlane.xlu0 %527
      %v529 = vsel %vm453, %v446, 0.0
      %530 = vadd.xlane.f32.xlu0 %v529
      %v531 = vpop.xlane.xlu0 %530
      %v532 = vsel %vm453, %v447, 0.0
      %533 = vadd.xlane.f32.xlu0 %v532
      %v534 = vpop.xlane.xlu0 %533
      %v535 = vsel %vm453, %v448, 0.0
      %536 = vadd.xlane.f32.xlu0 %v535
      %v537 = vpop.xlane.xlu0 %536
      %v538 = vsel %vm453, %v449, 0.0
      %539 = vadd.xlane.f32.xlu0 %v538
      %v540 = vpop.xlane.xlu0 %539
      %v541 = vsel %vm453, %v450, 0.0
      %542 = vadd.xlane.f32.xlu0 %v541
      %v543 = vpop.xlane.xlu0 %542
      %v544 = vsel %vm453, %v451, 0.0
      %545 = vadd.xlane.f32.xlu0 %v544
      %v546 = vpop.xlane.xlu0 %545
      %v547 = vsel %vm453, %v452, 0.0
      %548 = vadd.xlane.f32.xlu0 %v547
      %v549 = vpop.xlane.xlu0 %548
      %v551 = vsel %vm453, %v340, 0
      %v554 = vsel %vm453, %v341, 0
      %v557 = vsel %vm453, %v342, 0
      %v560 = vsel %vm453, %v343, 0
      %v563 = vsel %vm453, %v344, 0
      %v566 = vsel %vm453, %v345, 0
      %v569 = vsel %vm453, %v346, 0
      %v572 = vsel %vm453, %v347, 0
      %v575 = vsel %vm453, %v348, 0
      %v578 = vsel %vm453, %v349, 0
      %v581 = vsel %vm453, %v350, 0
      %v584 = vsel %vm453, %v351, 0
      %v587 = vsel %vm453, %v352, 0
      %v590 = vsel %vm453, %v353, 0
      %v593 = vsel %vm453, %v354, 0
      %v596 = vsel %vm453, %v355, 0
      %v599 = vsel %vm453, %v356, 0
      %v602 = vsel %vm453, %v357, 0
      %v605 = vsel %vm453, %v358, 0
      %v608 = vsel %vm453, %v359, 0
      %v611 = vsel %vm453, %v360, 0
      %v614 = vsel %vm453, %v361, 0
      %v617 = vsel %vm453, %v362, 0
      %v620 = vsel %vm453, %v363, 0
      %v623 = vsel %vm453, %v364, 0
      %v626 = vsel %vm453, %v365, 0
      %v629 = vsel %vm453, %v366, 0
      %v632 = vsel %vm453, %v367, 0
      %v635 = vsel %vm453, %v368, 0
      %v638 = vsel %vm453, %v369, 0
      %v641 = vsel %vm453, %v370, 0
      %v644 = vsel %vm453, %v371, 0
      %646 = vmatpush.msra.mxu0 0.0
      %647 = vmatpush.msra.mxu0 0.0
      %648 = vmatpush.msra.mxu0 0.0
      %649 = vmatpush.msra.mxu0 0.0
      %650 = vmatpush.msra.mxu0 0.0
      %651 = vmatpush.msra.mxu0 0.0
      %652 = vmatpush.msra.mxu0 0.0
      %653 = vmatpush.msra.mxu0 0.0
      %654 = vmatpush.msra.mxu0 %v418
      %655 = vmatpush.msra.mxu0 %v416
      %656 = vmatpush.msra.mxu0 %v414
      %657 = vmatpush.msra.mxu0 %v412
      %658 = vmatpush.msra.mxu0 %v410
      %659 = vmatpush.msra.mxu0 %v408
      %660 = vmatpush.msra.mxu0 %v406
      %661 = vmatpush.msra.mxu0 %v404
      %662 = vmatmul.f32.gmra.mxu0 %v551
      %v663 = vpop.f32.mrf.mxu0
      %v664 = vadd.f32 0.0, %v663
      %665 = vmatmul.f32.gmra.mxu0 %v554
      %v666 = vpop.f32.mrf.mxu0
      %v667 = vadd.f32 0.0, %v666
      %668 = vmatmul.f32.gmra.mxu0 %v557
      %v669 = vpop.f32.mrf.mxu0
      %v670 = vadd.f32 0.0, %v669
      %671 = vmatmul.f32.gmra.mxu0 %v560
      %v672 = vpop.f32.mrf.mxu0
      %v673 = vadd.f32 0.0, %v672
      %674 = vmatmul.f32.gmra.mxu0 %v563
      %v675 = vpop.f32.mrf.mxu0
      %v676 = vadd.f32 0.0, %v675
      %677 = vmatmul.f32.gmra.mxu0 %v566
      %v678 = vpop.f32.mrf.mxu0
      %v679 = vadd.f32 0.0, %v678
      %680 = vmatmul.f32.gmra.mxu0 %v569
      %v681 = vpop.f32.mrf.mxu0
      %v682 = vadd.f32 0.0, %v681
      %683 = vmatmul.f32.gmra.mxu0 %v572
      %v684 = vpop.f32.mrf.mxu0
      %v685 = vadd.f32 0.0, %v684
      %686 = vmatmul.f32.gmra.mxu0 %v575
      %v687 = vpop.f32.mrf.mxu0
      %v688 = vadd.f32 0.0, %v687
      %689 = vmatmul.f32.gmra.mxu0 %v578
      %v690 = vpop.f32.mrf.mxu0
      %v691 = vadd.f32 0.0, %v690
      %692 = vmatmul.f32.gmra.mxu0 %v581
      %v693 = vpop.f32.mrf.mxu0
      %v694 = vadd.f32 0.0, %v693
      %695 = vmatmul.f32.gmra.mxu0 %v584
      %v696 = vpop.f32.mrf.mxu0
      %v697 = vadd.f32 0.0, %v696
      %698 = vmatmul.f32.gmra.mxu0 %v587
      %v699 = vpop.f32.mrf.mxu0
      %v700 = vadd.f32 0.0, %v699
      %701 = vmatmul.f32.gmra.mxu0 %v590
      %v702 = vpop.f32.mrf.mxu0
      %v703 = vadd.f32 0.0, %v702
      %704 = vmatmul.f32.gmra.mxu0 %v593
      %v705 = vpop.f32.mrf.mxu0
      %v706 = vadd.f32 0.0, %v705
      %707 = vmatmul.f32.gmra.mxu0 %v596
      %v708 = vpop.f32.mrf.mxu0
      %v709 = vadd.f32 0.0, %v708
      %710 = vmatmul.f32.gmra.mxu0 %v599
      %v711 = vpop.f32.mrf.mxu0
      %v712 = vadd.f32 0.0, %v711
      %713 = vmatmul.f32.gmra.mxu0 %v602
      %v714 = vpop.f32.mrf.mxu0
      %v715 = vadd.f32 0.0, %v714
      %716 = vmatmul.f32.gmra.mxu0 %v605
      %v717 = vpop.f32.mrf.mxu0
      %v718 = vadd.f32 0.0, %v717
      %719 = vmatmul.f32.gmra.mxu0 %v608
      %v720 = vpop.f32.mrf.mxu0
      %v721 = vadd.f32 0.0, %v720
      %722 = vmatmul.f32.gmra.mxu0 %v611
      %v723 = vpop.f32.mrf.mxu0
      %v724 = vadd.f32 0.0, %v723
      %725 = vmatmul.f32.gmra.mxu0 %v614
      %v726 = vpop.f32.mrf.mxu0
      %v727 = vadd.f32 0.0, %v726
      %728 = vmatmul.f32.gmra.mxu0 %v617
      %v729 = vpop.f32.mrf.mxu0
      %v730 = vadd.f32 0.0, %v729
      %731 = vmatmul.f32.gmra.mxu0 %v620
      %v732 = vpop.f32.mrf.mxu0
      %v733 = vadd.f32 0.0, %v732
      %734 = vmatmul.f32.gmra.mxu0 %v623
      %v735 = vpop.f32.mrf.mxu0
      %v736 = vadd.f32 0.0, %v735
      %737 = vmatmul.f32.gmra.mxu0 %v626
      %v738 = vpop.f32.mrf.mxu0
      %v739 = vadd.f32 0.0, %v738
      %740 = vmatmul.f32.gmra.mxu0 %v629
      %v741 = vpop.f32.mrf.mxu0
      %v742 = vadd.f32 0.0, %v741
      %743 = vmatmul.f32.gmra.mxu0 %v632
      %v744 = vpop.f32.mrf.mxu0
      %v745 = vadd.f32 0.0, %v744
      %746 = vmatmul.f32.gmra.mxu0 %v635
      %v747 = vpop.f32.mrf.mxu0
      %v748 = vadd.f32 0.0, %v747
      %749 = vmatmul.f32.gmra.mxu0 %v638
      %v750 = vpop.f32.mrf.mxu0
      %v751 = vadd.f32 0.0, %v750
      %752 = vmatmul.f32.gmra.mxu0 %v641
      %v753 = vpop.f32.mrf.mxu0
      %v754 = vadd.f32 0.0, %v753
      %755 = vmatmul.f32.gmra.mxu0 %v644
      %v756 = vpop.f32.mrf.mxu0
      %v757 = vadd.f32 0.0, %v756
      %758 = vdwg.mxu0
      %759 = vmatpush.msra.mxu0 0.0
      %760 = vmatpush.msra.mxu0 0.0
      %761 = vmatpush.msra.mxu0 0.0
      %762 = vmatpush.msra.mxu0 0.0
      %763 = vmatpush.msra.mxu0 0.0
      %764 = vmatpush.msra.mxu0 0.0
      %765 = vmatpush.msra.mxu0 0.0
      %766 = vmatpush.msra.mxu0 0.0
      %767 = vmatpush.msra.mxu0 %v419
      %768 = vmatpush.msra.mxu0 %v417
      %769 = vmatpush.msra.mxu0 %v415
      %770 = vmatpush.msra.mxu0 %v413
      %771 = vmatpush.msra.mxu0 %v411
      %772 = vmatpush.msra.mxu0 %v409
      %773 = vmatpush.msra.mxu0 %v407
      %774 = vmatpush.msra.mxu0 %v405
      %775 = vmatmul.f32.gmra.mxu0 %v551
      %v776 = vpop.f32.mrf.mxu0
      %v777 = vadd.f32 0.0, %v776
      %778 = vmatmul.f32.gmra.mxu0 %v554
      %v779 = vpop.f32.mrf.mxu0
      %v780 = vadd.f32 0.0, %v779
      %781 = vmatmul.f32.gmra.mxu0 %v557
      %v782 = vpop.f32.mrf.mxu0
      %v783 = vadd.f32 0.0, %v782
      %784 = vmatmul.f32.gmra.mxu0 %v560
      %v785 = vpop.f32.mrf.mxu0
      %v786 = vadd.f32 0.0, %v785
      %787 = vmatmul.f32.gmra.mxu0 %v563
      %v788 = vpop.f32.mrf.mxu0
      %v789 = vadd.f32 0.0, %v788
      %790 = vmatmul.f32.gmra.mxu0 %v566
      %v791 = vpop.f32.mrf.mxu0
      %v792 = vadd.f32 0.0, %v791
      %793 = vmatmul.f32.gmra.mxu0 %v569
      %v794 = vpop.f32.mrf.mxu0
      %v795 = vadd.f32 0.0, %v794
      %796 = vmatmul.f32.gmra.mxu0 %v572
      %v797 = vpop.f32.mrf.mxu0
      %v798 = vadd.f32 0.0, %v797
      %799 = vmatmul.f32.gmra.mxu0 %v575
      %v800 = vpop.f32.mrf.mxu0
      %v801 = vadd.f32 0.0, %v800
      %802 = vmatmul.f32.gmra.mxu0 %v578
      %v803 = vpop.f32.mrf.mxu0
      %v804 = vadd.f32 0.0, %v803
      %805 = vmatmul.f32.gmra.mxu0 %v581
      %v806 = vpop.f32.mrf.mxu0
      %v807 = vadd.f32 0.0, %v806
      %808 = vmatmul.f32.gmra.mxu0 %v584
      %v809 = vpop.f32.mrf.mxu0
      %v810 = vadd.f32 0.0, %v809
      %811 = vmatmul.f32.gmra.mxu0 %v587
      %v812 = vpop.f32.mrf.mxu0
      %v813 = vadd.f32 0.0, %v812
      %814 = vmatmul.f32.gmra.mxu0 %v590
      %v815 = vpop.f32.mrf.mxu0
      %v816 = vadd.f32 0.0, %v815
      %817 = vmatmul.f32.gmra.mxu0 %v593
      %v818 = vpop.f32.mrf.mxu0
      %v819 = vadd.f32 0.0, %v818
      %820 = vmatmul.f32.gmra.mxu0 %v596
      %v821 = vpop.f32.mrf.mxu0
      %v822 = vadd.f32 0.0, %v821
      %823 = vmatmul.f32.gmra.mxu0 %v599
      %v824 = vpop.f32.mrf.mxu0
      %v825 = vadd.f32 0.0, %v824
      %826 = vmatmul.f32.gmra.mxu0 %v602
      %v827 = vpop.f32.mrf.mxu0
      %v828 = vadd.f32 0.0, %v827
      %829 = vmatmul.f32.gmra.mxu0 %v605
      %v830 = vpop.f32.mrf.mxu0
      %v831 = vadd.f32 0.0, %v830
      %832 = vmatmul.f32.gmra.mxu0 %v608
      %v833 = vpop.f32.mrf.mxu0
      %v834 = vadd.f32 0.0, %v833
      %835 = vmatmul.f32.gmra.mxu0 %v611
      %v836 = vpop.f32.mrf.mxu0
      %v837 = vadd.f32 0.0, %v836
      %838 = vmatmul.f32.gmra.mxu0 %v614
      %v839 = vpop.f32.mrf.mxu0
      %v840 = vadd.f32 0.0, %v839
      %841 = vmatmul.f32.gmra.mxu0 %v617
      %v842 = vpop.f32.mrf.mxu0
      %v843 = vadd.f32 0.0, %v842
      %844 = vmatmul.f32.gmra.mxu0 %v620
      %v845 = vpop.f32.mrf.mxu0
      %v846 = vadd.f32 0.0, %v845
      %847 = vmatmul.f32.gmra.mxu0 %v623
      %v848 = vpop.f32.mrf.mxu0
      %v849 = vadd.f32 0.0, %v848
      %850 = vmatmul.f32.gmra.mxu0 %v626
      %v851 = vpop.f32.mrf.mxu0
      %v852 = vadd.f32 0.0, %v851
      %853 = vmatmul.f32.gmra.mxu0 %v629
      %v854 = vpop.f32.mrf.mxu0
      %v855 = vadd.f32 0.0, %v854
      %856 = vmatmul.f32.gmra.mxu0 %v632
      %v857 = vpop.f32.mrf.mxu0
      %v858 = vadd.f32 0.0, %v857
      %859 = vmatmul.f32.gmra.mxu0 %v635
      %v860 = vpop.f32.mrf.mxu0
      %v861 = vadd.f32 0.0, %v860
      %862 = vmatmul.f32.gmra.mxu0 %v638
      %v863 = vpop.f32.mrf.mxu0
      %v864 = vadd.f32 0.0, %v863
      %865 = vmatmul.f32.gmra.mxu0 %v641
      %v866 = vpop.f32.mrf.mxu0
      %v867 = vadd.f32 0.0, %v866
      %868 = vmatmul.f32.gmra.mxu0 %v644
      %v869 = vpop.f32.mrf.mxu0
      %v870 = vadd.f32 0.0, %v869
      %871 = vdwg.mxu0
      %v873 = vperm.slane %v420, 0
      %v874 = vperm.slane %v420, 1
      %v877 = vadd.f32 %v456, %v873
      %v878 = vadd.f32 %v456, %v874
      %v879 = vadd.f32 %v459, %v873
      %v880 = vadd.f32 %v459, %v874
      %v881 = vadd.f32 %v462, %v873
      %v882 = vadd.f32 %v462, %v874
      %v883 = vadd.f32 %v465, %v873
      %v884 = vadd.f32 %v465, %v874
      %v885 = vadd.f32 %v468, %v873
      %v886 = vadd.f32 %v468, %v874
      %v887 = vadd.f32 %v471, %v873
      %v888 = vadd.f32 %v471, %v874
      %v889 = vadd.f32 %v474, %v873
      %v890 = vadd.f32 %v474, %v874
      %v891 = vadd.f32 %v477, %v873
      %v892 = vadd.f32 %v477, %v874
      %v893 = vadd.f32 %v480, %v873
      %v894 = vadd.f32 %v480, %v874
      %v895 = vadd.f32 %v483, %v873
      %v896 = vadd.f32 %v483, %v874
      %v897 = vadd.f32 %v486, %v873
      %v898 = vadd.f32 %v486, %v874
      %v899 = vadd.f32 %v489, %v873
      %v900 = vadd.f32 %v489, %v874
      %v901 = vadd.f32 %v492, %v873
      %v902 = vadd.f32 %v492, %v874
      %v903 = vadd.f32 %v495, %v873
      %v904 = vadd.f32 %v495, %v874
      %v905 = vadd.f32 %v498, %v873
      %v906 = vadd.f32 %v498, %v874
      %v907 = vadd.f32 %v501, %v873
      %v908 = vadd.f32 %v501, %v874
      %v909 = vadd.f32 %v504, %v873
      %v910 = vadd.f32 %v504, %v874
      %v911 = vadd.f32 %v507, %v873
      %v912 = vadd.f32 %v507, %v874
      %v913 = vadd.f32 %v510, %v873
      %v914 = vadd.f32 %v510, %v874
      %v915 = vadd.f32 %v513, %v873
      %v916 = vadd.f32 %v513, %v874
      %v917 = vadd.f32 %v516, %v873
      %v918 = vadd.f32 %v516, %v874
      %v919 = vadd.f32 %v519, %v873
      %v920 = vadd.f32 %v519, %v874
      %v921 = vadd.f32 %v522, %v873
      %v922 = vadd.f32 %v522, %v874
      %v923 = vadd.f32 %v525, %v873
      %v924 = vadd.f32 %v525, %v874
      %v925 = vadd.f32 %v528, %v873
      %v926 = vadd.f32 %v528, %v874
      %v927 = vadd.f32 %v531, %v873
      %v928 = vadd.f32 %v531, %v874
      %v929 = vadd.f32 %v534, %v873
      %v930 = vadd.f32 %v534, %v874
      %v931 = vadd.f32 %v537, %v873
      %v932 = vadd.f32 %v537, %v874
      %v933 = vadd.f32 %v540, %v873
      %v934 = vadd.f32 %v540, %v874
      %v935 = vadd.f32 %v543, %v873
      %v936 = vadd.f32 %v543, %v874
      %v937 = vadd.f32 %v546, %v873
      %v938 = vadd.f32 %v546, %v874
      %v939 = vadd.f32 %v549, %v873
      %v940 = vadd.f32 %v549, %v874
      %v941 = vmul.f32 %v664, 2.0
      %v942 = vmul.f32 %v777, 2.0
      %v943 = vmul.f32 %v667, 2.0
      %v944 = vmul.f32 %v780, 2.0
      %v945 = vmul.f32 %v670, 2.0
      %v946 = vmul.f32 %v783, 2.0
      %v947 = vmul.f32 %v673, 2.0
      %v948 = vmul.f32 %v786, 2.0
      %v949 = vmul.f32 %v676, 2.0
      %v950 = vmul.f32 %v789, 2.0
      %v951 = vmul.f32 %v679, 2.0
      %v952 = vmul.f32 %v792, 2.0
      %v953 = vmul.f32 %v682, 2.0
      %v954 = vmul.f32 %v795, 2.0
      %v955 = vmul.f32 %v685, 2.0
      %v956 = vmul.f32 %v798, 2.0
      %v957 = vmul.f32 %v688, 2.0
      %v958 = vmul.f32 %v801, 2.0
      %v959 = vmul.f32 %v691, 2.0
      %v960 = vmul.f32 %v804, 2.0
      %v961 = vmul.f32 %v694, 2.0
      %v962 = vmul.f32 %v807, 2.0
      %v963 = vmul.f32 %v697, 2.0
      %v964 = vmul.f32 %v810, 2.0
      %v965 = vmul.f32 %v700, 2.0
      %v966 = vmul.f32 %v813, 2.0
      %v967 = vmul.f32 %v703, 2.0
      %v968 = vmul.f32 %v816, 2.0
      %v969 = vmul.f32 %v706, 2.0
      %v970 = vmul.f32 %v819, 2.0
      %v971 = vmul.f32 %v709, 2.0
      %v972 = vmul.f32 %v822, 2.0
      %v973 = vmul.f32 %v712, 2.0
      %v974 = vmul.f32 %v825, 2.0
      %v975 = vmul.f32 %v715, 2.0
      %v976 = vmul.f32 %v828, 2.0
      %v977 = vmul.f32 %v718, 2.0
      %v978 = vmul.f32 %v831, 2.0
      %v979 = vmul.f32 %v721, 2.0
      %v980 = vmul.f32 %v834, 2.0
      %v981 = vmul.f32 %v724, 2.0
      %v982 = vmul.f32 %v837, 2.0
      %v983 = vmul.f32 %v727, 2.0
      %v984 = vmul.f32 %v840, 2.0
      %v985 = vmul.f32 %v730, 2.0
      %v986 = vmul.f32 %v843, 2.0
      %v987 = vmul.f32 %v733, 2.0
      %v988 = vmul.f32 %v846, 2.0
      %v989 = vmul.f32 %v736, 2.0
      %v990 = vmul.f32 %v849, 2.0
      %v991 = vmul.f32 %v739, 2.0
      %v992 = vmul.f32 %v852, 2.0
      %v993 = vmul.f32 %v742, 2.0
      %v994 = vmul.f32 %v855, 2.0
      %v995 = vmul.f32 %v745, 2.0
      %v996 = vmul.f32 %v858, 2.0
      %v997 = vmul.f32 %v748, 2.0
      %v998 = vmul.f32 %v861, 2.0
      %v999 = vmul.f32 %v751, 2.0
      %v1000 = vmul.f32 %v864, 2.0
      %v1001 = vmul.f32 %v754, 2.0
      %v1002 = vmul.f32 %v867, 2.0
      %v1003 = vmul.f32 %v757, 2.0
      %v1004 = vmul.f32 %v870, 2.0
      %v1005 = vsub.f32 %v877, %v941
      %v1006 = vsub.f32 %v878, %v942
      %v1007 = vsub.f32 %v879, %v943
      %v1008 = vsub.f32 %v880, %v944
      %v1009 = vsub.f32 %v881, %v945
      %v1010 = vsub.f32 %v882, %v946
      %v1011 = vsub.f32 %v883, %v947
      %v1012 = vsub.f32 %v884, %v948
      %v1013 = vsub.f32 %v885, %v949
      %v1014 = vsub.f32 %v886, %v950
      %v1015 = vsub.f32 %v887, %v951
      %v1016 = vsub.f32 %v888, %v952
      %v1017 = vsub.f32 %v889, %v953
      %v1018 = vsub.f32 %v890, %v954
      %v1019 = vsub.f32 %v891, %v955
      %v1020 = vsub.f32 %v892, %v956
      %v1021 = vsub.f32 %v893, %v957
      %v1022 = vsub.f32 %v894, %v958
      %v1023 = vsub.f32 %v895, %v959
      %v1024 = vsub.f32 %v896, %v960
      %v1025 = vsub.f32 %v897, %v961
      %v1026 = vsub.f32 %v898, %v962
      %v1027 = vsub.f32 %v899, %v963
      %v1028 = vsub.f32 %v900, %v964
      %v1029 = vsub.f32 %v901, %v965
      %v1030 = vsub.f32 %v902, %v966
      %v1031 = vsub.f32 %v903, %v967
      %v1032 = vsub.f32 %v904, %v968
      %v1033 = vsub.f32 %v905, %v969
      %v1034 = vsub.f32 %v906, %v970
      %v1035 = vsub.f32 %v907, %v971
      %v1036 = vsub.f32 %v908, %v972
      %v1037 = vsub.f32 %v909, %v973
      %v1038 = vsub.f32 %v910, %v974
      %v1039 = vsub.f32 %v911, %v975
      %v1040 = vsub.f32 %v912, %v976
      %v1041 = vsub.f32 %v913, %v977
      %v1042 = vsub.f32 %v914, %v978
      %v1043 = vsub.f32 %v915, %v979
      %v1044 = vsub.f32 %v916, %v980
      %v1045 = vsub.f32 %v917, %v981
      %v1046 = vsub.f32 %v918, %v982
      %v1047 = vsub.f32 %v919, %v983
      %v1048 = vsub.f32 %v920, %v984
      %v1049 = vsub.f32 %v921, %v985
      %v1050 = vsub.f32 %v922, %v986
      %v1051 = vsub.f32 %v923, %v987
      %v1052 = vsub.f32 %v924, %v988
      %v1053 = vsub.f32 %v925, %v989
      %v1054 = vsub.f32 %v926, %v990
      %v1055 = vsub.f32 %v927, %v991
      %v1056 = vsub.f32 %v928, %v992
      %v1057 = vsub.f32 %v929, %v993
      %v1058 = vsub.f32 %v930, %v994
      %v1059 = vsub.f32 %v931, %v995
      %v1060 = vsub.f32 %v932, %v996
      %v1061 = vsub.f32 %v933, %v997
      %v1062 = vsub.f32 %v934, %v998
      %v1063 = vsub.f32 %v935, %v999
      %v1064 = vsub.f32 %v936, %v1000
      %v1065 = vsub.f32 %v937, %v1001
      %v1066 = vsub.f32 %v938, %v1002
      %v1067 = vsub.f32 %v939, %v1003
      %v1068 = vsub.f32 %v940, %v1004
      %v1069 = vlaneseq
      %v1070 = vand.u32 %v1069, 127
      %v1071 = vadd.s32 %v1070, 128
      %v1072 = vmin.f32 %v1005, %v1006
      %1073 = vmin.xlane.f32.xlu0 %v1072
      %v1074 = vpop.xlane.xlu0 %1073
      %v1075 = vmin.f32 %v1007, %v1008
      %1076 = vmin.xlane.f32.xlu0 %v1075
      %v1077 = vpop.xlane.xlu0 %1076
      %v1078 = vmin.f32 %v1009, %v1010
      %1079 = vmin.xlane.f32.xlu0 %v1078
      %v1080 = vpop.xlane.xlu0 %1079
      %v1081 = vmin.f32 %v1011, %v1012
      %1082 = vmin.xlane.f32.xlu0 %v1081
      %v1083 = vpop.xlane.xlu0 %1082
      %v1084 = vmin.f32 %v1013, %v1014
      %1085 = vmin.xlane.f32.xlu0 %v1084
      %v1086 = vpop.xlane.xlu0 %1085
      %v1087 = vmin.f32 %v1015, %v1016
      %1088 = vmin.xlane.f32.xlu0 %v1087
      %v1089 = vpop.xlane.xlu0 %1088
      %v1090 = vmin.f32 %v1017, %v1018
      %1091 = vmin.xlane.f32.xlu0 %v1090
      %v1092 = vpop.xlane.xlu0 %1091
      %v1093 = vmin.f32 %v1019, %v1020
      %1094 = vmin.xlane.f32.xlu0 %v1093
      %v1095 = vpop.xlane.xlu0 %1094
      %v1096 = vmin.f32 %v1021, %v1022
      %1097 = vmin.xlane.f32.xlu0 %v1096
      %v1098 = vpop.xlane.xlu0 %1097
      %v1099 = vmin.f32 %v1023, %v1024
      %1100 = vmin.xlane.f32.xlu0 %v1099
      %v1101 = vpop.xlane.xlu0 %1100
      %v1102 = vmin.f32 %v1025, %v1026
      %1103 = vmin.xlane.f32.xlu0 %v1102
      %v1104 = vpop.xlane.xlu0 %1103
      %v1105 = vmin.f32 %v1027, %v1028
      %1106 = vmin.xlane.f32.xlu0 %v1105
      %v1107 = vpop.xlane.xlu0 %1106
      %v1108 = vmin.f32 %v1029, %v1030
      %1109 = vmin.xlane.f32.xlu0 %v1108
      %v1110 = vpop.xlane.xlu0 %1109
      %v1111 = vmin.f32 %v1031, %v1032
      %1112 = vmin.xlane.f32.xlu0 %v1111
      %v1113 = vpop.xlane.xlu0 %1112
      %v1114 = vmin.f32 %v1033, %v1034
      %1115 = vmin.xlane.f32.xlu0 %v1114
      %v1116 = vpop.xlane.xlu0 %1115
      %v1117 = vmin.f32 %v1035, %v1036
      %1118 = vmin.xlane.f32.xlu0 %v1117
      %v1119 = vpop.xlane.xlu0 %1118
      %v1120 = vmin.f32 %v1037, %v1038
      %1121 = vmin.xlane.f32.xlu0 %v1120
      %v1122 = vpop.xlane.xlu0 %1121
      %v1123 = vmin.f32 %v1039, %v1040
      %1124 = vmin.xlane.f32.xlu0 %v1123
      %v1125 = vpop.xlane.xlu0 %1124
      %v1126 = vmin.f32 %v1041, %v1042
      %1127 = vmin.xlane.f32.xlu0 %v1126
      %v1128 = vpop.xlane.xlu0 %1127
      %v1129 = vmin.f32 %v1043, %v1044
      %1130 = vmin.xlane.f32.xlu0 %v1129
      %v1131 = vpop.xlane.xlu0 %1130
      %v1132 = vmin.f32 %v1045, %v1046
      %1133 = vmin.xlane.f32.xlu0 %v1132
      %v1134 = vpop.xlane.xlu0 %1133
      %v1135 = vmin.f32 %v1047, %v1048
      %1136 = vmin.xlane.f32.xlu0 %v1135
      %v1137 = vpop.xlane.xlu0 %1136
      %v1138 = vmin.f32 %v1049, %v1050
      %1139 = vmin.xlane.f32.xlu0 %v1138
      %v1140 = vpop.xlane.xlu0 %1139
      %v1141 = vmin.f32 %v1051, %v1052
      %1142 = vmin.xlane.f32.xlu0 %v1141
      %v1143 = vpop.xlane.xlu0 %1142
      %v1144 = vmin.f32 %v1053, %v1054
      %1145 = vmin.xlane.f32.xlu0 %v1144
      %v1146 = vpop.xlane.xlu0 %1145
      %v1147 = vmin.f32 %v1055, %v1056
      %1148 = vmin.xlane.f32.xlu0 %v1147
      %v1149 = vpop.xlane.xlu0 %1148
      %v1150 = vmin.f32 %v1057, %v1058
      %1151 = vmin.xlane.f32.xlu0 %v1150
      %v1152 = vpop.xlane.xlu0 %1151
      %v1153 = vmin.f32 %v1059, %v1060
      %1154 = vmin.xlane.f32.xlu0 %v1153
      %v1155 = vpop.xlane.xlu0 %1154
      %v1156 = vmin.f32 %v1061, %v1062
      %1157 = vmin.xlane.f32.xlu0 %v1156
      %v1158 = vpop.xlane.xlu0 %1157
      %v1159 = vmin.f32 %v1063, %v1064
      %1160 = vmin.xlane.f32.xlu0 %v1159
      %v1161 = vpop.xlane.xlu0 %1160
      %v1162 = vmin.f32 %v1065, %v1066
      %1163 = vmin.xlane.f32.xlu0 %v1162
      %v1164 = vpop.xlane.xlu0 %1163
      %v1165 = vmin.f32 %v1067, %v1068
      %1166 = vmin.xlane.f32.xlu0 %v1165
      %v1167 = vpop.xlane.xlu0 %1166
      %vm1168 = vcmp.le.f32.partialorder %v1005, %v1074
      %vm1169 = vcmp.le.f32.partialorder %v1006, %v1074
      %vm1170 = vcmp.le.f32.partialorder %v1007, %v1077
      %vm1171 = vcmp.le.f32.partialorder %v1008, %v1077
      %vm1172 = vcmp.le.f32.partialorder %v1009, %v1080
      %vm1173 = vcmp.le.f32.partialorder %v1010, %v1080
      %vm1174 = vcmp.le.f32.partialorder %v1011, %v1083
      %vm1175 = vcmp.le.f32.partialorder %v1012, %v1083
      %vm1176 = vcmp.le.f32.partialorder %v1013, %v1086
      %vm1177 = vcmp.le.f32.partialorder %v1014, %v1086
      %vm1178 = vcmp.le.f32.partialorder %v1015, %v1089
      %vm1179 = vcmp.le.f32.partialorder %v1016, %v1089
      %vm1180 = vcmp.le.f32.partialorder %v1017, %v1092
      %vm1181 = vcmp.le.f32.partialorder %v1018, %v1092
      %vm1182 = vcmp.le.f32.partialorder %v1019, %v1095
      %vm1183 = vcmp.le.f32.partialorder %v1020, %v1095
      %vm1184 = vcmp.le.f32.partialorder %v1021, %v1098
      %vm1185 = vcmp.le.f32.partialorder %v1022, %v1098
      %vm1186 = vcmp.le.f32.partialorder %v1023, %v1101
      %vm1187 = vcmp.le.f32.partialorder %v1024, %v1101
      %vm1188 = vcmp.le.f32.partialorder %v1025, %v1104
      %vm1189 = vcmp.le.f32.partialorder %v1026, %v1104
      %vm1190 = vcmp.le.f32.partialorder %v1027, %v1107
      %vm1191 = vcmp.le.f32.partialorder %v1028, %v1107
      %vm1192 = vcmp.le.f32.partialorder %v1029, %v1110
      %vm1193 = vcmp.le.f32.partialorder %v1030, %v1110
      %vm1194 = vcmp.le.f32.partialorder %v1031, %v1113
      %vm1195 = vcmp.le.f32.partialorder %v1032, %v1113
      %vm1196 = vcmp.le.f32.partialorder %v1033, %v1116
      %vm1197 = vcmp.le.f32.partialorder %v1034, %v1116
      %vm1198 = vcmp.le.f32.partialorder %v1035, %v1119
      %vm1199 = vcmp.le.f32.partialorder %v1036, %v1119
      %vm1200 = vcmp.le.f32.partialorder %v1037, %v1122
      %vm1201 = vcmp.le.f32.partialorder %v1038, %v1122
      %vm1202 = vcmp.le.f32.partialorder %v1039, %v1125
      %vm1203 = vcmp.le.f32.partialorder %v1040, %v1125
      %vm1204 = vcmp.le.f32.partialorder %v1041, %v1128
      %vm1205 = vcmp.le.f32.partialorder %v1042, %v1128
      %vm1206 = vcmp.le.f32.partialorder %v1043, %v1131
      %vm1207 = vcmp.le.f32.partialorder %v1044, %v1131
      %vm1208 = vcmp.le.f32.partialorder %v1045, %v1134
      %vm1209 = vcmp.le.f32.partialorder %v1046, %v1134
      %vm1210 = vcmp.le.f32.partialorder %v1047, %v1137
      %vm1211 = vcmp.le.f32.partialorder %v1048, %v1137
      %vm1212 = vcmp.le.f32.partialorder %v1049, %v1140
      %vm1213 = vcmp.le.f32.partialorder %v1050, %v1140
      %vm1214 = vcmp.le.f32.partialorder %v1051, %v1143
      %vm1215 = vcmp.le.f32.partialorder %v1052, %v1143
      %vm1216 = vcmp.le.f32.partialorder %v1053, %v1146
      %vm1217 = vcmp.le.f32.partialorder %v1054, %v1146
      %vm1218 = vcmp.le.f32.partialorder %v1055, %v1149
      %vm1219 = vcmp.le.f32.partialorder %v1056, %v1149
      %vm1220 = vcmp.le.f32.partialorder %v1057, %v1152
      %vm1221 = vcmp.le.f32.partialorder %v1058, %v1152
      %vm1222 = vcmp.le.f32.partialorder %v1059, %v1155
      %vm1223 = vcmp.le.f32.partialorder %v1060, %v1155
      %vm1224 = vcmp.le.f32.partialorder %v1061, %v1158
      %vm1225 = vcmp.le.f32.partialorder %v1062, %v1158
      %vm1226 = vcmp.le.f32.partialorder %v1063, %v1161
      %vm1227 = vcmp.le.f32.partialorder %v1064, %v1161
      %vm1228 = vcmp.le.f32.partialorder %v1065, %v1164
      %vm1229 = vcmp.le.f32.partialorder %v1066, %v1164
      %vm1230 = vcmp.le.f32.partialorder %v1067, %v1167
      %vm1231 = vcmp.le.f32.partialorder %v1068, %v1167
      %v1232 = vsel %vm1168, %v1070, 256
      %v1233 = vsel %vm1169, %v1071, 256
      %v1234 = vsel %vm1170, %v1070, 256
      %v1235 = vsel %vm1171, %v1071, 256
      %v1236 = vsel %vm1172, %v1070, 256
      %v1237 = vsel %vm1173, %v1071, 256
      %v1238 = vsel %vm1174, %v1070, 256
      %v1239 = vsel %vm1175, %v1071, 256
      %v1240 = vsel %vm1176, %v1070, 256
      %v1241 = vsel %vm1177, %v1071, 256
      %v1242 = vsel %vm1178, %v1070, 256
      %v1243 = vsel %vm1179, %v1071, 256
      %v1244 = vsel %vm1180, %v1070, 256
      %v1245 = vsel %vm1181, %v1071, 256
      %v1246 = vsel %vm1182, %v1070, 256
      %v1247 = vsel %vm1183, %v1071, 256
      %v1248 = vsel %vm1184, %v1070, 256
      %v1249 = vsel %vm1185, %v1071, 256
      %v1250 = vsel %vm1186, %v1070, 256
      %v1251 = vsel %vm1187, %v1071, 256
      %v1252 = vsel %vm1188, %v1070, 256
      %v1253 = vsel %vm1189, %v1071, 256
      %v1254 = vsel %vm1190, %v1070, 256
      %v1255 = vsel %vm1191, %v1071, 256
      %v1256 = vsel %vm1192, %v1070, 256
      %v1257 = vsel %vm1193, %v1071, 256
      %v1258 = vsel %vm1194, %v1070, 256
      %v1259 = vsel %vm1195, %v1071, 256
      %v1260 = vsel %vm1196, %v1070, 256
      %v1261 = vsel %vm1197, %v1071, 256
      %v1262 = vsel %vm1198, %v1070, 256
      %v1263 = vsel %vm1199, %v1071, 256
      %v1264 = vsel %vm1200, %v1070, 256
      %v1265 = vsel %vm1201, %v1071, 256
      %v1266 = vsel %vm1202, %v1070, 256
      %v1267 = vsel %vm1203, %v1071, 256
      %v1268 = vsel %vm1204, %v1070, 256
      %v1269 = vsel %vm1205, %v1071, 256
      %v1270 = vsel %vm1206, %v1070, 256
      %v1271 = vsel %vm1207, %v1071, 256
      %v1272 = vsel %vm1208, %v1070, 256
      %v1273 = vsel %vm1209, %v1071, 256
      %v1274 = vsel %vm1210, %v1070, 256
      %v1275 = vsel %vm1211, %v1071, 256
      %v1276 = vsel %vm1212, %v1070, 256
      %v1277 = vsel %vm1213, %v1071, 256
      %v1278 = vsel %vm1214, %v1070, 256
      %v1279 = vsel %vm1215, %v1071, 256
      %v1280 = vsel %vm1216, %v1070, 256
      %v1281 = vsel %vm1217, %v1071, 256
      %v1282 = vsel %vm1218, %v1070, 256
      %v1283 = vsel %vm1219, %v1071, 256
      %v1284 = vsel %vm1220, %v1070, 256
      %v1285 = vsel %vm1221, %v1071, 256
      %v1286 = vsel %vm1222, %v1070, 256
      %v1287 = vsel %vm1223, %v1071, 256
      %v1288 = vsel %vm1224, %v1070, 256
      %v1289 = vsel %vm1225, %v1071, 256
      %v1290 = vsel %vm1226, %v1070, 256
      %v1291 = vsel %vm1227, %v1071, 256
      %v1292 = vsel %vm1228, %v1070, 256
      %v1293 = vsel %vm1229, %v1071, 256
      %v1294 = vsel %vm1230, %v1070, 256
      %v1295 = vsel %vm1231, %v1071, 256
      %vm1296 = vcmp.lt.s32.totalorder %v1232, %v1233
      %v1297 = vsel %vm1296, %v1232, %v1233
      %v1298 = vand.u32 %v1297, 65535
      %v1299 = vshra.s32 %v1297, 16
      %v1300 = vcvt.s32.f32 %v1298
      %v1301 = vcvt.s32.f32 %v1299
      %1302 = vmin.xlane.f32.xlu0 %v1301
      %v1303 = vpop.xlane.xlu0 %1302
      %vm1304 = vcmp.eq.f32.partialorder %v1301, %v1303
      %v1305 = vsel %vm1304, %v1300, inf
      %1306 = vmin.xlane.f32.xlu0 %v1305
      %v1307 = vpop.xlane.xlu0 %1306
      %v1308 = vcvt.f32.s32 %v1307
      %v1309 = vcvt.f32.s32 %v1303
      %v1310 = vshll.u32 %v1309, 16
      %v1311 = vadd.s32 %v1310, %v1308
      %vm1312 = vcmp.lt.s32.totalorder %v1234, %v1235
      %v1313 = vsel %vm1312, %v1234, %v1235
      %v1314 = vand.u32 %v1313, 65535
      %v1315 = vshra.s32 %v1313, 16
      %v1316 = vcvt.s32.f32 %v1314
      %v1317 = vcvt.s32.f32 %v1315
      %1318 = vmin.xlane.f32.xlu0 %v1317
      %v1319 = vpop.xlane.xlu0 %1318
      %vm1320 = vcmp.eq.f32.partialorder %v1317, %v1319
      %v1321 = vsel %vm1320, %v1316, inf
      %1322 = vmin.xlane.f32.xlu0 %v1321
      %v1323 = vpop.xlane.xlu0 %1322
      %v1324 = vcvt.f32.s32 %v1323
      %v1325 = vcvt.f32.s32 %v1319
      %v1326 = vshll.u32 %v1325, 16
      %v1327 = vadd.s32 %v1326, %v1324
      %vm1328 = vcmp.lt.s32.totalorder %v1236, %v1237
      %v1329 = vsel %vm1328, %v1236, %v1237
      %v1330 = vand.u32 %v1329, 65535
      %v1331 = vshra.s32 %v1329, 16
      %v1332 = vcvt.s32.f32 %v1330
      %v1333 = vcvt.s32.f32 %v1331
      %1334 = vmin.xlane.f32.xlu0 %v1333
      %v1335 = vpop.xlane.xlu0 %1334
      %vm1336 = vcmp.eq.f32.partialorder %v1333, %v1335
      %v1337 = vsel %vm1336, %v1332, inf
      %1338 = vmin.xlane.f32.xlu0 %v1337
      %v1339 = vpop.xlane.xlu0 %1338
      %v1340 = vcvt.f32.s32 %v1339
      %v1341 = vcvt.f32.s32 %v1335
      %v1342 = vshll.u32 %v1341, 16
      %v1343 = vadd.s32 %v1342, %v1340
      %vm1344 = vcmp.lt.s32.totalorder %v1238, %v1239
      %v1345 = vsel %vm1344, %v1238, %v1239
      %v1346 = vand.u32 %v1345, 65535
      %v1347 = vshra.s32 %v1345, 16
      %v1348 = vcvt.s32.f32 %v1346
      %v1349 = vcvt.s32.f32 %v1347
      %1350 = vmin.xlane.f32.xlu0 %v1349
      %v1351 = vpop.xlane.xlu0 %1350
      %vm1352 = vcmp.eq.f32.partialorder %v1349, %v1351
      %v1353 = vsel %vm1352, %v1348, inf
      %1354 = vmin.xlane.f32.xlu0 %v1353
      %v1355 = vpop.xlane.xlu0 %1354
      %v1356 = vcvt.f32.s32 %v1355
      %v1357 = vcvt.f32.s32 %v1351
      %v1358 = vshll.u32 %v1357, 16
      %v1359 = vadd.s32 %v1358, %v1356
      %vm1360 = vcmp.lt.s32.totalorder %v1240, %v1241
      %v1361 = vsel %vm1360, %v1240, %v1241
      %v1362 = vand.u32 %v1361, 65535
      %v1363 = vshra.s32 %v1361, 16
      %v1364 = vcvt.s32.f32 %v1362
      %v1365 = vcvt.s32.f32 %v1363
      %1366 = vmin.xlane.f32.xlu0 %v1365
      %v1367 = vpop.xlane.xlu0 %1366
      %vm1368 = vcmp.eq.f32.partialorder %v1365, %v1367
      %v1369 = vsel %vm1368, %v1364, inf
      %1370 = vmin.xlane.f32.xlu0 %v1369
      %v1371 = vpop.xlane.xlu0 %1370
      %v1372 = vcvt.f32.s32 %v1371
      %v1373 = vcvt.f32.s32 %v1367
      %v1374 = vshll.u32 %v1373, 16
      %v1375 = vadd.s32 %v1374, %v1372
      %vm1376 = vcmp.lt.s32.totalorder %v1242, %v1243
      %v1377 = vsel %vm1376, %v1242, %v1243
      %v1378 = vand.u32 %v1377, 65535
      %v1379 = vshra.s32 %v1377, 16
      %v1380 = vcvt.s32.f32 %v1378
      %v1381 = vcvt.s32.f32 %v1379
      %1382 = vmin.xlane.f32.xlu0 %v1381
      %v1383 = vpop.xlane.xlu0 %1382
      %vm1384 = vcmp.eq.f32.partialorder %v1381, %v1383
      %v1385 = vsel %vm1384, %v1380, inf
      %1386 = vmin.xlane.f32.xlu0 %v1385
      %v1387 = vpop.xlane.xlu0 %1386
      %v1388 = vcvt.f32.s32 %v1387
      %v1389 = vcvt.f32.s32 %v1383
      %v1390 = vshll.u32 %v1389, 16
      %v1391 = vadd.s32 %v1390, %v1388
      %vm1392 = vcmp.lt.s32.totalorder %v1244, %v1245
      %v1393 = vsel %vm1392, %v1244, %v1245
      %v1394 = vand.u32 %v1393, 65535
      %v1395 = vshra.s32 %v1393, 16
      %v1396 = vcvt.s32.f32 %v1394
      %v1397 = vcvt.s32.f32 %v1395
      %1398 = vmin.xlane.f32.xlu0 %v1397
      %v1399 = vpop.xlane.xlu0 %1398
      %vm1400 = vcmp.eq.f32.partialorder %v1397, %v1399
      %v1401 = vsel %vm1400, %v1396, inf
      %1402 = vmin.xlane.f32.xlu0 %v1401
      %v1403 = vpop.xlane.xlu0 %1402
      %v1404 = vcvt.f32.s32 %v1403
      %v1405 = vcvt.f32.s32 %v1399
      %v1406 = vshll.u32 %v1405, 16
      %v1407 = vadd.s32 %v1406, %v1404
      %vm1408 = vcmp.lt.s32.totalorder %v1246, %v1247
      %v1409 = vsel %vm1408, %v1246, %v1247
      %v1410 = vand.u32 %v1409, 65535
      %v1411 = vshra.s32 %v1409, 16
      %v1412 = vcvt.s32.f32 %v1410
      %v1413 = vcvt.s32.f32 %v1411
      %1414 = vmin.xlane.f32.xlu0 %v1413
      %v1415 = vpop.xlane.xlu0 %1414
      %vm1416 = vcmp.eq.f32.partialorder %v1413, %v1415
      %v1417 = vsel %vm1416, %v1412, inf
      %1418 = vmin.xlane.f32.xlu0 %v1417
      %v1419 = vpop.xlane.xlu0 %1418
      %v1420 = vcvt.f32.s32 %v1419
      %v1421 = vcvt.f32.s32 %v1415
      %v1422 = vshll.u32 %v1421, 16
      %v1423 = vadd.s32 %v1422, %v1420
      %vm1424 = vcmp.lt.s32.totalorder %v1248, %v1249
      %v1425 = vsel %vm1424, %v1248, %v1249
      %v1426 = vand.u32 %v1425, 65535
      %v1427 = vshra.s32 %v1425, 16
      %v1428 = vcvt.s32.f32 %v1426
      %v1429 = vcvt.s32.f32 %v1427
      %1430 = vmin.xlane.f32.xlu0 %v1429
      %v1431 = vpop.xlane.xlu0 %1430
      %vm1432 = vcmp.eq.f32.partialorder %v1429, %v1431
      %v1433 = vsel %vm1432, %v1428, inf
      %1434 = vmin.xlane.f32.xlu0 %v1433
      %v1435 = vpop.xlane.xlu0 %1434
      %v1436 = vcvt.f32.s32 %v1435
      %v1437 = vcvt.f32.s32 %v1431
      %v1438 = vshll.u32 %v1437, 16
      %v1439 = vadd.s32 %v1438, %v1436
      %vm1440 = vcmp.lt.s32.totalorder %v1250, %v1251
      %v1441 = vsel %vm1440, %v1250, %v1251
      %v1442 = vand.u32 %v1441, 65535
      %v1443 = vshra.s32 %v1441, 16
      %v1444 = vcvt.s32.f32 %v1442
      %v1445 = vcvt.s32.f32 %v1443
      %1446 = vmin.xlane.f32.xlu0 %v1445
      %v1447 = vpop.xlane.xlu0 %1446
      %vm1448 = vcmp.eq.f32.partialorder %v1445, %v1447
      %v1449 = vsel %vm1448, %v1444, inf
      %1450 = vmin.xlane.f32.xlu0 %v1449
      %v1451 = vpop.xlane.xlu0 %1450
      %v1452 = vcvt.f32.s32 %v1451
      %v1453 = vcvt.f32.s32 %v1447
      %v1454 = vshll.u32 %v1453, 16
      %v1455 = vadd.s32 %v1454, %v1452
      %vm1456 = vcmp.lt.s32.totalorder %v1252, %v1253
      %v1457 = vsel %vm1456, %v1252, %v1253
      %v1458 = vand.u32 %v1457, 65535
      %v1459 = vshra.s32 %v1457, 16
      %v1460 = vcvt.s32.f32 %v1458
      %v1461 = vcvt.s32.f32 %v1459
      %1462 = vmin.xlane.f32.xlu0 %v1461
      %v1463 = vpop.xlane.xlu0 %1462
      %vm1464 = vcmp.eq.f32.partialorder %v1461, %v1463
      %v1465 = vsel %vm1464, %v1460, inf
      %1466 = vmin.xlane.f32.xlu0 %v1465
      %v1467 = vpop.xlane.xlu0 %1466
      %v1468 = vcvt.f32.s32 %v1467
      %v1469 = vcvt.f32.s32 %v1463
      %v1470 = vshll.u32 %v1469, 16
      %v1471 = vadd.s32 %v1470, %v1468
      %vm1472 = vcmp.lt.s32.totalorder %v1254, %v1255
      %v1473 = vsel %vm1472, %v1254, %v1255
      %v1474 = vand.u32 %v1473, 65535
      %v1475 = vshra.s32 %v1473, 16
      %v1476 = vcvt.s32.f32 %v1474
      %v1477 = vcvt.s32.f32 %v1475
      %1478 = vmin.xlane.f32.xlu0 %v1477
      %v1479 = vpop.xlane.xlu0 %1478
      %vm1480 = vcmp.eq.f32.partialorder %v1477, %v1479
      %v1481 = vsel %vm1480, %v1476, inf
      %1482 = vmin.xlane.f32.xlu0 %v1481
      %v1483 = vpop.xlane.xlu0 %1482
      %v1484 = vcvt.f32.s32 %v1483
      %v1485 = vcvt.f32.s32 %v1479
      %v1486 = vshll.u32 %v1485, 16
      %v1487 = vadd.s32 %v1486, %v1484
      %vm1488 = vcmp.lt.s32.totalorder %v1256, %v1257
      %v1489 = vsel %vm1488, %v1256, %v1257
      %v1490 = vand.u32 %v1489, 65535
      %v1491 = vshra.s32 %v1489, 16
      %v1492 = vcvt.s32.f32 %v1490
      %v1493 = vcvt.s32.f32 %v1491
      %1494 = vmin.xlane.f32.xlu0 %v1493
      %v1495 = vpop.xlane.xlu0 %1494
      %vm1496 = vcmp.eq.f32.partialorder %v1493, %v1495
      %v1497 = vsel %vm1496, %v1492, inf
      %1498 = vmin.xlane.f32.xlu0 %v1497
      %v1499 = vpop.xlane.xlu0 %1498
      %v1500 = vcvt.f32.s32 %v1499
      %v1501 = vcvt.f32.s32 %v1495
      %v1502 = vshll.u32 %v1501, 16
      %v1503 = vadd.s32 %v1502, %v1500
      %vm1504 = vcmp.lt.s32.totalorder %v1258, %v1259
      %v1505 = vsel %vm1504, %v1258, %v1259
      %v1506 = vand.u32 %v1505, 65535
      %v1507 = vshra.s32 %v1505, 16
      %v1508 = vcvt.s32.f32 %v1506
      %v1509 = vcvt.s32.f32 %v1507
      %1510 = vmin.xlane.f32.xlu0 %v1509
      %v1511 = vpop.xlane.xlu0 %1510
      %vm1512 = vcmp.eq.f32.partialorder %v1509, %v1511
      %v1513 = vsel %vm1512, %v1508, inf
      %1514 = vmin.xlane.f32.xlu0 %v1513
      %v1515 = vpop.xlane.xlu0 %1514
      %v1516 = vcvt.f32.s32 %v1515
      %v1517 = vcvt.f32.s32 %v1511
      %v1518 = vshll.u32 %v1517, 16
      %v1519 = vadd.s32 %v1518, %v1516
      %vm1520 = vcmp.lt.s32.totalorder %v1260, %v1261
      %v1521 = vsel %vm1520, %v1260, %v1261
      %v1522 = vand.u32 %v1521, 65535
      %v1523 = vshra.s32 %v1521, 16
      %v1524 = vcvt.s32.f32 %v1522
      %v1525 = vcvt.s32.f32 %v1523
      %1526 = vmin.xlane.f32.xlu0 %v1525
      %v1527 = vpop.xlane.xlu0 %1526
      %vm1528 = vcmp.eq.f32.partialorder %v1525, %v1527
      %v1529 = vsel %vm1528, %v1524, inf
      %1530 = vmin.xlane.f32.xlu0 %v1529
      %v1531 = vpop.xlane.xlu0 %1530
      %v1532 = vcvt.f32.s32 %v1531
      %v1533 = vcvt.f32.s32 %v1527
      %v1534 = vshll.u32 %v1533, 16
      %v1535 = vadd.s32 %v1534, %v1532
      %vm1536 = vcmp.lt.s32.totalorder %v1262, %v1263
      %v1537 = vsel %vm1536, %v1262, %v1263
      %v1538 = vand.u32 %v1537, 65535
      %v1539 = vshra.s32 %v1537, 16
      %v1540 = vcvt.s32.f32 %v1538
      %v1541 = vcvt.s32.f32 %v1539
      %1542 = vmin.xlane.f32.xlu0 %v1541
      %v1543 = vpop.xlane.xlu0 %1542
      %vm1544 = vcmp.eq.f32.partialorder %v1541, %v1543
      %v1545 = vsel %vm1544, %v1540, inf
      %1546 = vmin.xlane.f32.xlu0 %v1545
      %v1547 = vpop.xlane.xlu0 %1546
      %v1548 = vcvt.f32.s32 %v1547
      %v1549 = vcvt.f32.s32 %v1543
      %v1550 = vshll.u32 %v1549, 16
      %v1551 = vadd.s32 %v1550, %v1548
      %vm1552 = vcmp.lt.s32.totalorder %v1264, %v1265
      %v1553 = vsel %vm1552, %v1264, %v1265
      %v1554 = vand.u32 %v1553, 65535
      %v1555 = vshra.s32 %v1553, 16
      %v1556 = vcvt.s32.f32 %v1554
      %v1557 = vcvt.s32.f32 %v1555
      %1558 = vmin.xlane.f32.xlu0 %v1557
      %v1559 = vpop.xlane.xlu0 %1558
      %vm1560 = vcmp.eq.f32.partialorder %v1557, %v1559
      %v1561 = vsel %vm1560, %v1556, inf
      %1562 = vmin.xlane.f32.xlu0 %v1561
      %v1563 = vpop.xlane.xlu0 %1562
      %v1564 = vcvt.f32.s32 %v1563
      %v1565 = vcvt.f32.s32 %v1559
      %v1566 = vshll.u32 %v1565, 16
      %v1567 = vadd.s32 %v1566, %v1564
      %vm1568 = vcmp.lt.s32.totalorder %v1266, %v1267
      %v1569 = vsel %vm1568, %v1266, %v1267
      %v1570 = vand.u32 %v1569, 65535
      %v1571 = vshra.s32 %v1569, 16
      %v1572 = vcvt.s32.f32 %v1570
      %v1573 = vcvt.s32.f32 %v1571
      %1574 = vmin.xlane.f32.xlu0 %v1573
      %v1575 = vpop.xlane.xlu0 %1574
      %vm1576 = vcmp.eq.f32.partialorder %v1573, %v1575
      %v1577 = vsel %vm1576, %v1572, inf
      %1578 = vmin.xlane.f32.xlu0 %v1577
      %v1579 = vpop.xlane.xlu0 %1578
      %v1580 = vcvt.f32.s32 %v1579
      %v1581 = vcvt.f32.s32 %v1575
      %v1582 = vshll.u32 %v1581, 16
      %v1583 = vadd.s32 %v1582, %v1580
      %vm1584 = vcmp.lt.s32.totalorder %v1268, %v1269
      %v1585 = vsel %vm1584, %v1268, %v1269
      %v1586 = vand.u32 %v1585, 65535
      %v1587 = vshra.s32 %v1585, 16
      %v1588 = vcvt.s32.f32 %v1586
      %v1589 = vcvt.s32.f32 %v1587
      %1590 = vmin.xlane.f32.xlu0 %v1589
      %v1591 = vpop.xlane.xlu0 %1590
      %vm1592 = vcmp.eq.f32.partialorder %v1589, %v1591
      %v1593 = vsel %vm1592, %v1588, inf
      %1594 = vmin.xlane.f32.xlu0 %v1593
      %v1595 = vpop.xlane.xlu0 %1594
      %v1596 = vcvt.f32.s32 %v1595
      %v1597 = vcvt.f32.s32 %v1591
      %v1598 = vshll.u32 %v1597, 16
      %v1599 = vadd.s32 %v1598, %v1596
      %vm1600 = vcmp.lt.s32.totalorder %v1270, %v1271
      %v1601 = vsel %vm1600, %v1270, %v1271
      %v1602 = vand.u32 %v1601, 65535
      %v1603 = vshra.s32 %v1601, 16
      %v1604 = vcvt.s32.f32 %v1602
      %v1605 = vcvt.s32.f32 %v1603
      %1606 = vmin.xlane.f32.xlu0 %v1605
      %v1607 = vpop.xlane.xlu0 %1606
      %vm1608 = vcmp.eq.f32.partialorder %v1605, %v1607
      %v1609 = vsel %vm1608, %v1604, inf
      %1610 = vmin.xlane.f32.xlu0 %v1609
      %v1611 = vpop.xlane.xlu0 %1610
      %v1612 = vcvt.f32.s32 %v1611
      %v1613 = vcvt.f32.s32 %v1607
      %v1614 = vshll.u32 %v1613, 16
      %v1615 = vadd.s32 %v1614, %v1612
      %vm1616 = vcmp.lt.s32.totalorder %v1272, %v1273
      %v1617 = vsel %vm1616, %v1272, %v1273
      %v1618 = vand.u32 %v1617, 65535
      %v1619 = vshra.s32 %v1617, 16
      %v1620 = vcvt.s32.f32 %v1618
      %v1621 = vcvt.s32.f32 %v1619
      %1622 = vmin.xlane.f32.xlu0 %v1621
      %v1623 = vpop.xlane.xlu0 %1622
      %vm1624 = vcmp.eq.f32.partialorder %v1621, %v1623
      %v1625 = vsel %vm1624, %v1620, inf
      %1626 = vmin.xlane.f32.xlu0 %v1625
      %v1627 = vpop.xlane.xlu0 %1626
      %v1628 = vcvt.f32.s32 %v1627
      %v1629 = vcvt.f32.s32 %v1623
      %v1630 = vshll.u32 %v1629, 16
      %v1631 = vadd.s32 %v1630, %v1628
      %vm1632 = vcmp.lt.s32.totalorder %v1274, %v1275
      %v1633 = vsel %vm1632, %v1274, %v1275
      %v1634 = vand.u32 %v1633, 65535
      %v1635 = vshra.s32 %v1633, 16
      %v1636 = vcvt.s32.f32 %v1634
      %v1637 = vcvt.s32.f32 %v1635
      %1638 = vmin.xlane.f32.xlu0 %v1637
      %v1639 = vpop.xlane.xlu0 %1638
      %vm1640 = vcmp.eq.f32.partialorder %v1637, %v1639
      %v1641 = vsel %vm1640, %v1636, inf
      %1642 = vmin.xlane.f32.xlu0 %v1641
      %v1643 = vpop.xlane.xlu0 %1642
      %v1644 = vcvt.f32.s32 %v1643
      %v1645 = vcvt.f32.s32 %v1639
      %v1646 = vshll.u32 %v1645, 16
      %v1647 = vadd.s32 %v1646, %v1644
      %vm1648 = vcmp.lt.s32.totalorder %v1276, %v1277
      %v1649 = vsel %vm1648, %v1276, %v1277
      %v1650 = vand.u32 %v1649, 65535
      %v1651 = vshra.s32 %v1649, 16
      %v1652 = vcvt.s32.f32 %v1650
      %v1653 = vcvt.s32.f32 %v1651
      %1654 = vmin.xlane.f32.xlu0 %v1653
      %v1655 = vpop.xlane.xlu0 %1654
      %vm1656 = vcmp.eq.f32.partialorder %v1653, %v1655
      %v1657 = vsel %vm1656, %v1652, inf
      %1658 = vmin.xlane.f32.xlu0 %v1657
      %v1659 = vpop.xlane.xlu0 %1658
      %v1660 = vcvt.f32.s32 %v1659
      %v1661 = vcvt.f32.s32 %v1655
      %v1662 = vshll.u32 %v1661, 16
      %v1663 = vadd.s32 %v1662, %v1660
      %vm1664 = vcmp.lt.s32.totalorder %v1278, %v1279
      %v1665 = vsel %vm1664, %v1278, %v1279
      %v1666 = vand.u32 %v1665, 65535
      %v1667 = vshra.s32 %v1665, 16
      %v1668 = vcvt.s32.f32 %v1666
      %v1669 = vcvt.s32.f32 %v1667
      %1670 = vmin.xlane.f32.xlu0 %v1669
      %v1671 = vpop.xlane.xlu0 %1670
      %vm1672 = vcmp.eq.f32.partialorder %v1669, %v1671
      %v1673 = vsel %vm1672, %v1668, inf
      %1674 = vmin.xlane.f32.xlu0 %v1673
      %v1675 = vpop.xlane.xlu0 %1674
      %v1676 = vcvt.f32.s32 %v1675
      %v1677 = vcvt.f32.s32 %v1671
      %v1678 = vshll.u32 %v1677, 16
      %v1679 = vadd.s32 %v1678, %v1676
      %vm1680 = vcmp.lt.s32.totalorder %v1280, %v1281
      %v1681 = vsel %vm1680, %v1280, %v1281
      %v1682 = vand.u32 %v1681, 65535
      %v1683 = vshra.s32 %v1681, 16
      %v1684 = vcvt.s32.f32 %v1682
      %v1685 = vcvt.s32.f32 %v1683
      %1686 = vmin.xlane.f32.xlu0 %v1685
      %v1687 = vpop.xlane.xlu0 %1686
      %vm1688 = vcmp.eq.f32.partialorder %v1685, %v1687
      %v1689 = vsel %vm1688, %v1684, inf
      %1690 = vmin.xlane.f32.xlu0 %v1689
      %v1691 = vpop.xlane.xlu0 %1690
      %v1692 = vcvt.f32.s32 %v1691
      %v1693 = vcvt.f32.s32 %v1687
      %v1694 = vshll.u32 %v1693, 16
      %v1695 = vadd.s32 %v1694, %v1692
      %vm1696 = vcmp.lt.s32.totalorder %v1282, %v1283
      %v1697 = vsel %vm1696, %v1282, %v1283
      %v1698 = vand.u32 %v1697, 65535
      %v1699 = vshra.s32 %v1697, 16
      %v1700 = vcvt.s32.f32 %v1698
      %v1701 = vcvt.s32.f32 %v1699
      %1702 = vmin.xlane.f32.xlu0 %v1701
      %v1703 = vpop.xlane.xlu0 %1702
      %vm1704 = vcmp.eq.f32.partialorder %v1701, %v1703
      %v1705 = vsel %vm1704, %v1700, inf
      %1706 = vmin.xlane.f32.xlu0 %v1705
      %v1707 = vpop.xlane.xlu0 %1706
      %v1708 = vcvt.f32.s32 %v1707
      %v1709 = vcvt.f32.s32 %v1703
      %v1710 = vshll.u32 %v1709, 16
      %v1711 = vadd.s32 %v1710, %v1708
      %vm1712 = vcmp.lt.s32.totalorder %v1284, %v1285
      %v1713 = vsel %vm1712, %v1284, %v1285
      %v1714 = vand.u32 %v1713, 65535
      %v1715 = vshra.s32 %v1713, 16
      %v1716 = vcvt.s32.f32 %v1714
      %v1717 = vcvt.s32.f32 %v1715
      %1718 = vmin.xlane.f32.xlu0 %v1717
      %v1719 = vpop.xlane.xlu0 %1718
      %vm1720 = vcmp.eq.f32.partialorder %v1717, %v1719
      %v1721 = vsel %vm1720, %v1716, inf
      %1722 = vmin.xlane.f32.xlu0 %v1721
      %v1723 = vpop.xlane.xlu0 %1722
      %v1724 = vcvt.f32.s32 %v1723
      %v1725 = vcvt.f32.s32 %v1719
      %v1726 = vshll.u32 %v1725, 16
      %v1727 = vadd.s32 %v1726, %v1724
      %vm1728 = vcmp.lt.s32.totalorder %v1286, %v1287
      %v1729 = vsel %vm1728, %v1286, %v1287
      %v1730 = vand.u32 %v1729, 65535
      %v1731 = vshra.s32 %v1729, 16
      %v1732 = vcvt.s32.f32 %v1730
      %v1733 = vcvt.s32.f32 %v1731
      %1734 = vmin.xlane.f32.xlu0 %v1733
      %v1735 = vpop.xlane.xlu0 %1734
      %vm1736 = vcmp.eq.f32.partialorder %v1733, %v1735
      %v1737 = vsel %vm1736, %v1732, inf
      %1738 = vmin.xlane.f32.xlu0 %v1737
      %v1739 = vpop.xlane.xlu0 %1738
      %v1740 = vcvt.f32.s32 %v1739
      %v1741 = vcvt.f32.s32 %v1735
      %v1742 = vshll.u32 %v1741, 16
      %v1743 = vadd.s32 %v1742, %v1740
      %vm1744 = vcmp.lt.s32.totalorder %v1288, %v1289
      %v1745 = vsel %vm1744, %v1288, %v1289
      %v1746 = vand.u32 %v1745, 65535
      %v1747 = vshra.s32 %v1745, 16
      %v1748 = vcvt.s32.f32 %v1746
      %v1749 = vcvt.s32.f32 %v1747
      %1750 = vmin.xlane.f32.xlu0 %v1749
      %v1751 = vpop.xlane.xlu0 %1750
      %vm1752 = vcmp.eq.f32.partialorder %v1749, %v1751
      %v1753 = vsel %vm1752, %v1748, inf
      %1754 = vmin.xlane.f32.xlu0 %v1753
      %v1755 = vpop.xlane.xlu0 %1754
      %v1756 = vcvt.f32.s32 %v1755
      %v1757 = vcvt.f32.s32 %v1751
      %v1758 = vshll.u32 %v1757, 16
      %v1759 = vadd.s32 %v1758, %v1756
      %vm1760 = vcmp.lt.s32.totalorder %v1290, %v1291
      %v1761 = vsel %vm1760, %v1290, %v1291
      %v1762 = vand.u32 %v1761, 65535
      %v1763 = vshra.s32 %v1761, 16
      %v1764 = vcvt.s32.f32 %v1762
      %v1765 = vcvt.s32.f32 %v1763
      %1766 = vmin.xlane.f32.xlu0 %v1765
      %v1767 = vpop.xlane.xlu0 %1766
      %vm1768 = vcmp.eq.f32.partialorder %v1765, %v1767
      %v1769 = vsel %vm1768, %v1764, inf
      %1770 = vmin.xlane.f32.xlu0 %v1769
      %v1771 = vpop.xlane.xlu0 %1770
      %v1772 = vcvt.f32.s32 %v1771
      %v1773 = vcvt.f32.s32 %v1767
      %v1774 = vshll.u32 %v1773, 16
      %v1775 = vadd.s32 %v1774, %v1772
      %vm1776 = vcmp.lt.s32.totalorder %v1292, %v1293
      %v1777 = vsel %vm1776, %v1292, %v1293
      %v1778 = vand.u32 %v1777, 65535
      %v1779 = vshra.s32 %v1777, 16
      %v1780 = vcvt.s32.f32 %v1778
      %v1781 = vcvt.s32.f32 %v1779
      %1782 = vmin.xlane.f32.xlu0 %v1781
      %v1783 = vpop.xlane.xlu0 %1782
      %vm1784 = vcmp.eq.f32.partialorder %v1781, %v1783
      %v1785 = vsel %vm1784, %v1780, inf
      %1786 = vmin.xlane.f32.xlu0 %v1785
      %v1787 = vpop.xlane.xlu0 %1786
      %v1788 = vcvt.f32.s32 %v1787
      %v1789 = vcvt.f32.s32 %v1783
      %v1790 = vshll.u32 %v1789, 16
      %v1791 = vadd.s32 %v1790, %v1788
      %vm1792 = vcmp.lt.s32.totalorder %v1294, %v1295
      %v1793 = vsel %vm1792, %v1294, %v1295
      %v1794 = vand.u32 %v1793, 65535
      %v1795 = vshra.s32 %v1793, 16
      %v1796 = vcvt.s32.f32 %v1794
      %v1797 = vcvt.s32.f32 %v1795
      %1798 = vmin.xlane.f32.xlu0 %v1797
      %v1799 = vpop.xlane.xlu0 %1798
      %vm1800 = vcmp.eq.f32.partialorder %v1797, %v1799
      %v1801 = vsel %vm1800, %v1796, inf
      %1802 = vmin.xlane.f32.xlu0 %v1801
      %v1803 = vpop.xlane.xlu0 %1802
      %v1804 = vcvt.f32.s32 %v1803
      %v1805 = vcvt.f32.s32 %v1799
      %v1806 = vshll.u32 %v1805, 16
      %v1807 = vadd.s32 %v1806, %v1804
      %vm1808 = vcmp.eq.s32.totalorder %v1070, %v1311
      %vm1809 = vcmp.eq.s32.totalorder %v1071, %v1311
      %vm1810 = vcmp.eq.s32.totalorder %v1070, %v1327
      %vm1811 = vcmp.eq.s32.totalorder %v1071, %v1327
      %vm1812 = vcmp.eq.s32.totalorder %v1070, %v1343
      %vm1813 = vcmp.eq.s32.totalorder %v1071, %v1343
      %vm1814 = vcmp.eq.s32.totalorder %v1070, %v1359
      %vm1815 = vcmp.eq.s32.totalorder %v1071, %v1359
      %vm1816 = vcmp.eq.s32.totalorder %v1070, %v1375
      %vm1817 = vcmp.eq.s32.totalorder %v1071, %v1375
      %vm1818 = vcmp.eq.s32.totalorder %v1070, %v1391
      %vm1819 = vcmp.eq.s32.totalorder %v1071, %v1391
      %vm1820 = vcmp.eq.s32.totalorder %v1070, %v1407
      %vm1821 = vcmp.eq.s32.totalorder %v1071, %v1407
      %vm1822 = vcmp.eq.s32.totalorder %v1070, %v1423
      %vm1823 = vcmp.eq.s32.totalorder %v1071, %v1423
      %vm1824 = vcmp.eq.s32.totalorder %v1070, %v1439
      %vm1825 = vcmp.eq.s32.totalorder %v1071, %v1439
      %vm1826 = vcmp.eq.s32.totalorder %v1070, %v1455
      %vm1827 = vcmp.eq.s32.totalorder %v1071, %v1455
      %vm1828 = vcmp.eq.s32.totalorder %v1070, %v1471
      %vm1829 = vcmp.eq.s32.totalorder %v1071, %v1471
      %vm1830 = vcmp.eq.s32.totalorder %v1070, %v1487
      %vm1831 = vcmp.eq.s32.totalorder %v1071, %v1487
      %vm1832 = vcmp.eq.s32.totalorder %v1070, %v1503
      %vm1833 = vcmp.eq.s32.totalorder %v1071, %v1503
      %vm1834 = vcmp.eq.s32.totalorder %v1070, %v1519
      %vm1835 = vcmp.eq.s32.totalorder %v1071, %v1519
      %vm1836 = vcmp.eq.s32.totalorder %v1070, %v1535
      %vm1837 = vcmp.eq.s32.totalorder %v1071, %v1535
      %vm1838 = vcmp.eq.s32.totalorder %v1070, %v1551
      %vm1839 = vcmp.eq.s32.totalorder %v1071, %v1551
      %vm1840 = vcmp.eq.s32.totalorder %v1070, %v1567
      %vm1841 = vcmp.eq.s32.totalorder %v1071, %v1567
      %vm1842 = vcmp.eq.s32.totalorder %v1070, %v1583
      %vm1843 = vcmp.eq.s32.totalorder %v1071, %v1583
      %vm1844 = vcmp.eq.s32.totalorder %v1070, %v1599
      %vm1845 = vcmp.eq.s32.totalorder %v1071, %v1599
      %vm1846 = vcmp.eq.s32.totalorder %v1070, %v1615
      %vm1847 = vcmp.eq.s32.totalorder %v1071, %v1615
      %vm1848 = vcmp.eq.s32.totalorder %v1070, %v1631
      %vm1849 = vcmp.eq.s32.totalorder %v1071, %v1631
      %vm1850 = vcmp.eq.s32.totalorder %v1070, %v1647
      %vm1851 = vcmp.eq.s32.totalorder %v1071, %v1647
      %vm1852 = vcmp.eq.s32.totalorder %v1070, %v1663
      %vm1853 = vcmp.eq.s32.totalorder %v1071, %v1663
      %vm1854 = vcmp.eq.s32.totalorder %v1070, %v1679
      %vm1855 = vcmp.eq.s32.totalorder %v1071, %v1679
      %vm1856 = vcmp.eq.s32.totalorder %v1070, %v1695
      %vm1857 = vcmp.eq.s32.totalorder %v1071, %v1695
      %vm1858 = vcmp.eq.s32.totalorder %v1070, %v1711
      %vm1859 = vcmp.eq.s32.totalorder %v1071, %v1711
      %vm1860 = vcmp.eq.s32.totalorder %v1070, %v1727
      %vm1861 = vcmp.eq.s32.totalorder %v1071, %v1727
      %vm1862 = vcmp.eq.s32.totalorder %v1070, %v1743
      %vm1863 = vcmp.eq.s32.totalorder %v1071, %v1743
      %vm1864 = vcmp.eq.s32.totalorder %v1070, %v1759
      %vm1865 = vcmp.eq.s32.totalorder %v1071, %v1759
      %vm1866 = vcmp.eq.s32.totalorder %v1070, %v1775
      %vm1867 = vcmp.eq.s32.totalorder %v1071, %v1775
      %vm1868 = vcmp.eq.s32.totalorder %v1070, %v1791
      %vm1869 = vcmp.eq.s32.totalorder %v1071, %v1791
      %vm1870 = vcmp.eq.s32.totalorder %v1070, %v1807
      %vm1871 = vcmp.eq.s32.totalorder %v1071, %v1807
      %v1872 = vsel %vm1808, 1, 0
      %v1873 = vsel %vm1809, 1, 0
      %v1874 = vsel %vm1810, 1, 0
      %v1875 = vsel %vm1811, 1, 0
      %v1876 = vsel %vm1812, 1, 0
      %v1877 = vsel %vm1813, 1, 0
      %v1878 = vsel %vm1814, 1, 0
      %v1879 = vsel %vm1815, 1, 0
      %v1880 = vsel %vm1816, 1, 0
      %v1881 = vsel %vm1817, 1, 0
      %v1882 = vsel %vm1818, 1, 0
      %v1883 = vsel %vm1819, 1, 0
      %v1884 = vsel %vm1820, 1, 0
      %v1885 = vsel %vm1821, 1, 0
      %v1886 = vsel %vm1822, 1, 0
      %v1887 = vsel %vm1823, 1, 0
      %v1888 = vsel %vm1824, 1, 0
      %v1889 = vsel %vm1825, 1, 0
      %v1890 = vsel %vm1826, 1, 0
      %v1891 = vsel %vm1827, 1, 0
      %v1892 = vsel %vm1828, 1, 0
      %v1893 = vsel %vm1829, 1, 0
      %v1894 = vsel %vm1830, 1, 0
      %v1895 = vsel %vm1831, 1, 0
      %v1896 = vsel %vm1832, 1, 0
      %v1897 = vsel %vm1833, 1, 0
      %v1898 = vsel %vm1834, 1, 0
      %v1899 = vsel %vm1835, 1, 0
      %v1900 = vsel %vm1836, 1, 0
      %v1901 = vsel %vm1837, 1, 0
      %v1902 = vsel %vm1838, 1, 0
      %v1903 = vsel %vm1839, 1, 0
      %v1904 = vsel %vm1840, 1, 0
      %v1905 = vsel %vm1841, 1, 0
      %v1906 = vsel %vm1842, 1, 0
      %v1907 = vsel %vm1843, 1, 0
      %v1908 = vsel %vm1844, 1, 0
      %v1909 = vsel %vm1845, 1, 0
      %v1910 = vsel %vm1846, 1, 0
      %v1911 = vsel %vm1847, 1, 0
      %v1912 = vsel %vm1848, 1, 0
      %v1913 = vsel %vm1849, 1, 0
      %v1914 = vsel %vm1850, 1, 0
      %v1915 = vsel %vm1851, 1, 0
      %v1916 = vsel %vm1852, 1, 0
      %v1917 = vsel %vm1853, 1, 0
      %v1918 = vsel %vm1854, 1, 0
      %v1919 = vsel %vm1855, 1, 0
      %v1920 = vsel %vm1856, 1, 0
      %v1921 = vsel %vm1857, 1, 0
      %v1922 = vsel %vm1858, 1, 0
      %v1923 = vsel %vm1859, 1, 0
      %v1924 = vsel %vm1860, 1, 0
      %v1925 = vsel %vm1861, 1, 0
      %v1926 = vsel %vm1862, 1, 0
      %v1927 = vsel %vm1863, 1, 0
      %v1928 = vsel %vm1864, 1, 0
      %v1929 = vsel %vm1865, 1, 0
      %v1930 = vsel %vm1866, 1, 0
      %v1931 = vsel %vm1867, 1, 0
      %v1932 = vsel %vm1868, 1, 0
      %v1933 = vsel %vm1869, 1, 0
      %v1934 = vsel %vm1870, 1, 0
      %v1935 = vsel %vm1871, 1, 0
      %v1936 = vcvt.s32.f32 %v1872
      %v1937 = vcvt.s32.f32 %v1873
      %v1938 = vcvt.s32.f32 %v1874
      %v1939 = vcvt.s32.f32 %v1875
      %v1940 = vcvt.s32.f32 %v1876
      %v1941 = vcvt.s32.f32 %v1877
      %v1942 = vcvt.s32.f32 %v1878
      %v1943 = vcvt.s32.f32 %v1879
      %v1944 = vcvt.s32.f32 %v1880
      %v1945 = vcvt.s32.f32 %v1881
      %v1946 = vcvt.s32.f32 %v1882
      %v1947 = vcvt.s32.f32 %v1883
      %v1948 = vcvt.s32.f32 %v1884
      %v1949 = vcvt.s32.f32 %v1885
      %v1950 = vcvt.s32.f32 %v1886
      %v1951 = vcvt.s32.f32 %v1887
      %v1952 = vcvt.s32.f32 %v1888
      %v1953 = vcvt.s32.f32 %v1889
      %v1954 = vcvt.s32.f32 %v1890
      %v1955 = vcvt.s32.f32 %v1891
      %v1956 = vcvt.s32.f32 %v1892
      %v1957 = vcvt.s32.f32 %v1893
      %v1958 = vcvt.s32.f32 %v1894
      %v1959 = vcvt.s32.f32 %v1895
      %v1960 = vcvt.s32.f32 %v1896
      %v1961 = vcvt.s32.f32 %v1897
      %v1962 = vcvt.s32.f32 %v1898
      %v1963 = vcvt.s32.f32 %v1899
      %v1964 = vcvt.s32.f32 %v1900
      %v1965 = vcvt.s32.f32 %v1901
      %v1966 = vcvt.s32.f32 %v1902
      %v1967 = vcvt.s32.f32 %v1903
      %v1968 = vcvt.s32.f32 %v1904
      %v1969 = vcvt.s32.f32 %v1905
      %v1970 = vcvt.s32.f32 %v1906
      %v1971 = vcvt.s32.f32 %v1907
      %v1972 = vcvt.s32.f32 %v1908
      %v1973 = vcvt.s32.f32 %v1909
      %v1974 = vcvt.s32.f32 %v1910
      %v1975 = vcvt.s32.f32 %v1911
      %v1976 = vcvt.s32.f32 %v1912
      %v1977 = vcvt.s32.f32 %v1913
      %v1978 = vcvt.s32.f32 %v1914
      %v1979 = vcvt.s32.f32 %v1915
      %v1980 = vcvt.s32.f32 %v1916
      %v1981 = vcvt.s32.f32 %v1917
      %v1982 = vcvt.s32.f32 %v1918
      %v1983 = vcvt.s32.f32 %v1919
      %v1984 = vcvt.s32.f32 %v1920
      %v1985 = vcvt.s32.f32 %v1921
      %v1986 = vcvt.s32.f32 %v1922
      %v1987 = vcvt.s32.f32 %v1923
      %v1988 = vcvt.s32.f32 %v1924
      %v1989 = vcvt.s32.f32 %v1925
      %v1990 = vcvt.s32.f32 %v1926
      %v1991 = vcvt.s32.f32 %v1927
      %v1992 = vcvt.s32.f32 %v1928
      %v1993 = vcvt.s32.f32 %v1929
      %v1994 = vcvt.s32.f32 %v1930
      %v1995 = vcvt.s32.f32 %v1931
      %v1996 = vcvt.s32.f32 %v1932
      %v1997 = vcvt.s32.f32 %v1933
      %v1998 = vcvt.s32.f32 %v1934
      %v1999 = vcvt.s32.f32 %v1935
      %2000 = vmatpush.msra.mxu0 %v387
      %2001 = vmatpush.msra.mxu0 %v386
      %2002 = vmatpush.msra.mxu0 %v385
      %2003 = vmatpush.msra.mxu0 %v384
      %2004 = vmatpush.msra.mxu0 %v383
      %2005 = vmatpush.msra.mxu0 %v382
      %2006 = vmatpush.msra.mxu0 %v381
      %2007 = vmatpush.msra.mxu0 %v380
      %2008 = vmatpush.msra.mxu0 %v379
      %2009 = vmatpush.msra.mxu0 %v378
      %2010 = vmatpush.msra.mxu0 %v377
      %2011 = vmatpush.msra.mxu0 %v376
      %2012 = vmatpush.msra.mxu0 %v375
      %2013 = vmatpush.msra.mxu0 %v374
      %2014 = vmatpush.msra.mxu0 %v373
      %2015 = vmatpush.msra.mxu0 %v372
      %2016 = vmatmul.f32.gmra.mxu0 %v1936
      %v2017 = vpop.f32.mrf.mxu0
      %v2018 = vadd.f32 0.0, %v2017
      %2019 = vmatmul.f32.gmra.mxu0 %v1938
      %v2020 = vpop.f32.mrf.mxu0
      %v2021 = vadd.f32 0.0, %v2020
      %2022 = vmatmul.f32.gmra.mxu0 %v1940
      %v2023 = vpop.f32.mrf.mxu0
      %v2024 = vadd.f32 0.0, %v2023
      %2025 = vmatmul.f32.gmra.mxu0 %v1942
      %v2026 = vpop.f32.mrf.mxu0
      %v2027 = vadd.f32 0.0, %v2026
      %2028 = vmatmul.f32.gmra.mxu0 %v1944
      %v2029 = vpop.f32.mrf.mxu0
      %v2030 = vadd.f32 0.0, %v2029
      %2031 = vmatmul.f32.gmra.mxu0 %v1946
      %v2032 = vpop.f32.mrf.mxu0
      %v2033 = vadd.f32 0.0, %v2032
      %2034 = vmatmul.f32.gmra.mxu0 %v1948
      %v2035 = vpop.f32.mrf.mxu0
      %v2036 = vadd.f32 0.0, %v2035
      %2037 = vmatmul.f32.gmra.mxu0 %v1950
      %v2038 = vpop.f32.mrf.mxu0
      %v2039 = vadd.f32 0.0, %v2038
      %2040 = vmatmul.f32.gmra.mxu0 %v1952
      %v2041 = vpop.f32.mrf.mxu0
      %v2042 = vadd.f32 0.0, %v2041
      %2043 = vmatmul.f32.gmra.mxu0 %v1954
      %v2044 = vpop.f32.mrf.mxu0
      %v2045 = vadd.f32 0.0, %v2044
      %2046 = vmatmul.f32.gmra.mxu0 %v1956
      %v2047 = vpop.f32.mrf.mxu0
      %v2048 = vadd.f32 0.0, %v2047
      %2049 = vmatmul.f32.gmra.mxu0 %v1958
      %v2050 = vpop.f32.mrf.mxu0
      %v2051 = vadd.f32 0.0, %v2050
      %2052 = vmatmul.f32.gmra.mxu0 %v1960
      %v2053 = vpop.f32.mrf.mxu0
      %v2054 = vadd.f32 0.0, %v2053
      %2055 = vmatmul.f32.gmra.mxu0 %v1962
      %v2056 = vpop.f32.mrf.mxu0
      %v2057 = vadd.f32 0.0, %v2056
      %2058 = vmatmul.f32.gmra.mxu0 %v1964
      %v2059 = vpop.f32.mrf.mxu0
      %v2060 = vadd.f32 0.0, %v2059
      %2061 = vmatmul.f32.gmra.mxu0 %v1966
      %v2062 = vpop.f32.mrf.mxu0
      %v2063 = vadd.f32 0.0, %v2062
      %2064 = vmatmul.f32.gmra.mxu0 %v1968
      %v2065 = vpop.f32.mrf.mxu0
      %v2066 = vadd.f32 0.0, %v2065
      %2067 = vmatmul.f32.gmra.mxu0 %v1970
      %v2068 = vpop.f32.mrf.mxu0
      %v2069 = vadd.f32 0.0, %v2068
      %2070 = vmatmul.f32.gmra.mxu0 %v1972
      %v2071 = vpop.f32.mrf.mxu0
      %v2072 = vadd.f32 0.0, %v2071
      %2073 = vmatmul.f32.gmra.mxu0 %v1974
      %v2074 = vpop.f32.mrf.mxu0
      %v2075 = vadd.f32 0.0, %v2074
      %2076 = vmatmul.f32.gmra.mxu0 %v1976
      %v2077 = vpop.f32.mrf.mxu0
      %v2078 = vadd.f32 0.0, %v2077
      %2079 = vmatmul.f32.gmra.mxu0 %v1978
      %v2080 = vpop.f32.mrf.mxu0
      %v2081 = vadd.f32 0.0, %v2080
      %2082 = vmatmul.f32.gmra.mxu0 %v1980
      %v2083 = vpop.f32.mrf.mxu0
      %v2084 = vadd.f32 0.0, %v2083
      %2085 = vmatmul.f32.gmra.mxu0 %v1982
      %v2086 = vpop.f32.mrf.mxu0
      %v2087 = vadd.f32 0.0, %v2086
      %2088 = vmatmul.f32.gmra.mxu0 %v1984
      %v2089 = vpop.f32.mrf.mxu0
      %v2090 = vadd.f32 0.0, %v2089
      %2091 = vmatmul.f32.gmra.mxu0 %v1986
      %v2092 = vpop.f32.mrf.mxu0
      %v2093 = vadd.f32 0.0, %v2092
      %2094 = vmatmul.f32.gmra.mxu0 %v1988
      %v2095 = vpop.f32.mrf.mxu0
      %v2096 = vadd.f32 0.0, %v2095
      %2097 = vmatmul.f32.gmra.mxu0 %v1990
      %v2098 = vpop.f32.mrf.mxu0
      %v2099 = vadd.f32 0.0, %v2098
      %2100 = vmatmul.f32.gmra.mxu0 %v1992
      %v2101 = vpop.f32.mrf.mxu0
      %v2102 = vadd.f32 0.0, %v2101
      %2103 = vmatmul.f32.gmra.mxu0 %v1994
      %v2104 = vpop.f32.mrf.mxu0
      %v2105 = vadd.f32 0.0, %v2104
      %2106 = vmatmul.f32.gmra.mxu0 %v1996
      %v2107 = vpop.f32.mrf.mxu0
      %v2108 = vadd.f32 0.0, %v2107
      %2109 = vmatmul.f32.gmra.mxu0 %v1998
      %v2110 = vpop.f32.mrf.mxu0
      %v2111 = vadd.f32 0.0, %v2110
      %2112 = vdwg.mxu0
      %2113 = vmatpush.msra.mxu0 %v403
      %2114 = vmatpush.msra.mxu0 %v402
      %2115 = vmatpush.msra.mxu0 %v401
      %2116 = vmatpush.msra.mxu0 %v400
      %2117 = vmatpush.msra.mxu0 %v399
      %2118 = vmatpush.msra.mxu0 %v398
      %2119 = vmatpush.msra.mxu0 %v397
      %2120 = vmatpush.msra.mxu0 %v396
      %2121 = vmatpush.msra.mxu0 %v395
      %2122 = vmatpush.msra.mxu0 %v394
      %2123 = vmatpush.msra.mxu0 %v393
      %2124 = vmatpush.msra.mxu0 %v392
      %2125 = vmatpush.msra.mxu0 %v391
      %2126 = vmatpush.msra.mxu0 %v390
      %2127 = vmatpush.msra.mxu0 %v389
      %2128 = vmatpush.msra.mxu0 %v388
      %2129 = vmatmul.f32.gmra.mxu0 %v1937
      %v2130 = vpop.f32.mrf.mxu0
      %v2131 = vadd.f32 %v2018, %v2130
      %2132 = vmatmul.f32.gmra.mxu0 %v1939
      %v2133 = vpop.f32.mrf.mxu0
      %v2134 = vadd.f32 %v2021, %v2133
      %2135 = vmatmul.f32.gmra.mxu0 %v1941
      %v2136 = vpop.f32.mrf.mxu0
      %v2137 = vadd.f32 %v2024, %v2136
      %2138 = vmatmul.f32.gmra.mxu0 %v1943
      %v2139 = vpop.f32.mrf.mxu0
      %v2140 = vadd.f32 %v2027, %v2139
      %2141 = vmatmul.f32.gmra.mxu0 %v1945
      %v2142 = vpop.f32.mrf.mxu0
      %v2143 = vadd.f32 %v2030, %v2142
      %2144 = vmatmul.f32.gmra.mxu0 %v1947
      %v2145 = vpop.f32.mrf.mxu0
      %v2146 = vadd.f32 %v2033, %v2145
      %2147 = vmatmul.f32.gmra.mxu0 %v1949
      %v2148 = vpop.f32.mrf.mxu0
      %v2149 = vadd.f32 %v2036, %v2148
      %2150 = vmatmul.f32.gmra.mxu0 %v1951
      %v2151 = vpop.f32.mrf.mxu0
      %v2152 = vadd.f32 %v2039, %v2151
      %2153 = vmatmul.f32.gmra.mxu0 %v1953
      %v2154 = vpop.f32.mrf.mxu0
      %v2155 = vadd.f32 %v2042, %v2154
      %2156 = vmatmul.f32.gmra.mxu0 %v1955
      %v2157 = vpop.f32.mrf.mxu0
      %v2158 = vadd.f32 %v2045, %v2157
      %2159 = vmatmul.f32.gmra.mxu0 %v1957
      %v2160 = vpop.f32.mrf.mxu0
      %v2161 = vadd.f32 %v2048, %v2160
      %2162 = vmatmul.f32.gmra.mxu0 %v1959
      %v2163 = vpop.f32.mrf.mxu0
      %v2164 = vadd.f32 %v2051, %v2163
      %2165 = vmatmul.f32.gmra.mxu0 %v1961
      %v2166 = vpop.f32.mrf.mxu0
      %v2167 = vadd.f32 %v2054, %v2166
      %2168 = vmatmul.f32.gmra.mxu0 %v1963
      %v2169 = vpop.f32.mrf.mxu0
      %v2170 = vadd.f32 %v2057, %v2169
      %2171 = vmatmul.f32.gmra.mxu0 %v1965
      %v2172 = vpop.f32.mrf.mxu0
      %v2173 = vadd.f32 %v2060, %v2172
      %2174 = vmatmul.f32.gmra.mxu0 %v1967
      %v2175 = vpop.f32.mrf.mxu0
      %v2176 = vadd.f32 %v2063, %v2175
      %2177 = vmatmul.f32.gmra.mxu0 %v1969
      %v2178 = vpop.f32.mrf.mxu0
      %v2179 = vadd.f32 %v2066, %v2178
      %2180 = vmatmul.f32.gmra.mxu0 %v1971
      %v2181 = vpop.f32.mrf.mxu0
      %v2182 = vadd.f32 %v2069, %v2181
      %2183 = vmatmul.f32.gmra.mxu0 %v1973
      %v2184 = vpop.f32.mrf.mxu0
      %v2185 = vadd.f32 %v2072, %v2184
      %2186 = vmatmul.f32.gmra.mxu0 %v1975
      %v2187 = vpop.f32.mrf.mxu0
      %v2188 = vadd.f32 %v2075, %v2187
      %2189 = vmatmul.f32.gmra.mxu0 %v1977
      %v2190 = vpop.f32.mrf.mxu0
      %v2191 = vadd.f32 %v2078, %v2190
      %2192 = vmatmul.f32.gmra.mxu0 %v1979
      %v2193 = vpop.f32.mrf.mxu0
      %v2194 = vadd.f32 %v2081, %v2193
      %2195 = vmatmul.f32.gmra.mxu0 %v1981
      %v2196 = vpop.f32.mrf.mxu0
      %v2197 = vadd.f32 %v2084, %v2196
      %2198 = vmatmul.f32.gmra.mxu0 %v1983
      %v2199 = vpop.f32.mrf.mxu0
      %v2200 = vadd.f32 %v2087, %v2199
      %2201 = vmatmul.f32.gmra.mxu0 %v1985
      %v2202 = vpop.f32.mrf.mxu0
      %v2203 = vadd.f32 %v2090, %v2202
      %2204 = vmatmul.f32.gmra.mxu0 %v1987
      %v2205 = vpop.f32.mrf.mxu0
      %v2206 = vadd.f32 %v2093, %v2205
      %2207 = vmatmul.f32.gmra.mxu0 %v1989
      %v2208 = vpop.f32.mrf.mxu0
      %v2209 = vadd.f32 %v2096, %v2208
      %2210 = vmatmul.f32.gmra.mxu0 %v1991
      %v2211 = vpop.f32.mrf.mxu0
      %v2212 = vadd.f32 %v2099, %v2211
      %2213 = vmatmul.f32.gmra.mxu0 %v1993
      %v2214 = vpop.f32.mrf.mxu0
      %v2215 = vadd.f32 %v2102, %v2214
      %2216 = vmatmul.f32.gmra.mxu0 %v1995
      %v2217 = vpop.f32.mrf.mxu0
      %v2218 = vadd.f32 %v2105, %v2217
      %2219 = vmatmul.f32.gmra.mxu0 %v1997
      %v2220 = vpop.f32.mrf.mxu0
      %v2221 = vadd.f32 %v2108, %v2220
      %2222 = vmatmul.f32.gmra.mxu0 %v1999
      %v2223 = vpop.f32.mrf.mxu0
      %v2224 = vadd.f32 %v2111, %v2223
      %2225 = vdwg.mxu0
      %2226 = vst.msk [vmem:[%s331] sm:$0xff] %vm453, %v2131
      %2227 = vst.msk [vmem:[%s331 + $0x8] sm:$0xff] %vm453, %v2134
      %2228 = vst.msk [vmem:[%s331 + $0x10] sm:$0xff] %vm453, %v2137
      %2229 = vst.msk [vmem:[%s331 + $0x18] sm:$0xff] %vm453, %v2140
      %2230 = vst.msk [vmem:[%s331 + $0x20] sm:$0xff] %vm453, %v2143
      %2231 = vst.msk [vmem:[%s331 + $0x28] sm:$0xff] %vm453, %v2146
      %2232 = vst.msk [vmem:[%s331 + $0x30] sm:$0xff] %vm453, %v2149
      %2233 = vst.msk [vmem:[%s331 + $0x38] sm:$0xff] %vm453, %v2152
      %2234 = vst.msk [vmem:[%s331 + $0x40] sm:$0xff] %vm453, %v2155
      %2235 = vst.msk [vmem:[%s331 + $0x48] sm:$0xff] %vm453, %v2158
      %2236 = vst.msk [vmem:[%s331 + $0x50] sm:$0xff] %vm453, %v2161
      %2237 = vst.msk [vmem:[%s331 + $0x58] sm:$0xff] %vm453, %v2164
      %2238 = vst.msk [vmem:[%s331 + $0x60] sm:$0xff] %vm453, %v2167
      %2239 = vst.msk [vmem:[%s331 + $0x68] sm:$0xff] %vm453, %v2170
      %2240 = vst.msk [vmem:[%s331 + $0x70] sm:$0xff] %vm453, %v2173
      %2241 = vst.msk [vmem:[%s331 + $0x78] sm:$0xff] %vm453, %v2176
      %2242 = vst.msk [vmem:[%s331 + $0x80] sm:$0xff] %vm453, %v2179
      %2243 = vst.msk [vmem:[%s331 + $0x88] sm:$0xff] %vm453, %v2182
      %2244 = vst.msk [vmem:[%s331 + $0x90] sm:$0xff] %vm453, %v2185
      %2245 = vst.msk [vmem:[%s331 + $0x98] sm:$0xff] %vm453, %v2188
      %2246 = vst.msk [vmem:[%s331 + $0xa0] sm:$0xff] %vm453, %v2191
      %2247 = vst.msk [vmem:[%s331 + $0xa8] sm:$0xff] %vm453, %v2194
      %2248 = vst.msk [vmem:[%s331 + $0xb0] sm:$0xff] %vm453, %v2197
      %2249 = vst.msk [vmem:[%s331 + $0xb8] sm:$0xff] %vm453, %v2200
      %2250 = vst.msk [vmem:[%s331 + $0xc0] sm:$0xff] %vm453, %v2203
      %2251 = vst.msk [vmem:[%s331 + $0xc8] sm:$0xff] %vm453, %v2206
      %2252 = vst.msk [vmem:[%s331 + $0xd0] sm:$0xff] %vm453, %v2209
      %2253 = vst.msk [vmem:[%s331 + $0xd8] sm:$0xff] %vm453, %v2212
      %2254 = vst.msk [vmem:[%s331 + $0xe0] sm:$0xff] %vm453, %v2215
      %2255 = vst.msk [vmem:[%s331 + $0xe8] sm:$0xff] %vm453, %v2218
      %2256 = vst.msk [vmem:[%s331 + $0xf0] sm:$0xff] %vm453, %v2221
      %2257 = vst.msk [vmem:[%s331 + $0xf8] sm:$0xff] %vm453, %v2224
      %v2258 = vsub.f32 %v340, %v2131
      %v2259 = vsub.f32 %v341, %v2134
      %v2260 = vsub.f32 %v342, %v2137
      %v2261 = vsub.f32 %v343, %v2140
      %v2262 = vsub.f32 %v344, %v2143
      %v2263 = vsub.f32 %v345, %v2146
      %v2264 = vsub.f32 %v346, %v2149
      %v2265 = vsub.f32 %v347, %v2152
      %v2266 = vsub.f32 %v348, %v2155
      %v2267 = vsub.f32 %v349, %v2158
      %v2268 = vsub.f32 %v350, %v2161
      %v2269 = vsub.f32 %v351, %v2164
      %v2270 = vsub.f32 %v352, %v2167
      %v2271 = vsub.f32 %v353, %v2170
      %v2272 = vsub.f32 %v354, %v2173
      %v2273 = vsub.f32 %v355, %v2176
      %v2274 = vsub.f32 %v356, %v2179
      %v2275 = vsub.f32 %v357, %v2182
      %v2276 = vsub.f32 %v358, %v2185
      %v2277 = vsub.f32 %v359, %v2188
      %v2278 = vsub.f32 %v360, %v2191
      %v2279 = vsub.f32 %v361, %v2194
      %v2280 = vsub.f32 %v362, %v2197
      %v2281 = vsub.f32 %v363, %v2200
      %v2282 = vsub.f32 %v364, %v2203
      %v2283 = vsub.f32 %v365, %v2206
      %v2284 = vsub.f32 %v366, %v2209
      %v2285 = vsub.f32 %v367, %v2212
      %v2286 = vsub.f32 %v368, %v2215
      %v2287 = vsub.f32 %v369, %v2218
      %v2288 = vsub.f32 %v370, %v2221
      %v2289 = vsub.f32 %v371, %v2224
      %v2290 = vmul.f32 %v2258, %v2258
      %v2291 = vmul.f32 %v2259, %v2259
      %v2292 = vmul.f32 %v2260, %v2260
      %v2293 = vmul.f32 %v2261, %v2261
      %v2294 = vmul.f32 %v2262, %v2262
      %v2295 = vmul.f32 %v2263, %v2263
      %v2296 = vmul.f32 %v2264, %v2264
      %v2297 = vmul.f32 %v2265, %v2265
      %v2298 = vmul.f32 %v2266, %v2266
      %v2299 = vmul.f32 %v2267, %v2267
      %v2300 = vmul.f32 %v2268, %v2268
      %v2301 = vmul.f32 %v2269, %v2269
      %v2302 = vmul.f32 %v2270, %v2270
      %v2303 = vmul.f32 %v2271, %v2271
      %v2304 = vmul.f32 %v2272, %v2272
      %v2305 = vmul.f32 %v2273, %v2273
      %v2306 = vmul.f32 %v2274, %v2274
      %v2307 = vmul.f32 %v2275, %v2275
      %v2308 = vmul.f32 %v2276, %v2276
      %v2309 = vmul.f32 %v2277, %v2277
      %v2310 = vmul.f32 %v2278, %v2278
      %v2311 = vmul.f32 %v2279, %v2279
      %v2312 = vmul.f32 %v2280, %v2280
      %v2313 = vmul.f32 %v2281, %v2281
      %v2314 = vmul.f32 %v2282, %v2282
      %v2315 = vmul.f32 %v2283, %v2283
      %v2316 = vmul.f32 %v2284, %v2284
      %v2317 = vmul.f32 %v2285, %v2285
      %v2318 = vmul.f32 %v2286, %v2286
      %v2319 = vmul.f32 %v2287, %v2287
      %v2320 = vmul.f32 %v2288, %v2288
      %v2321 = vmul.f32 %v2289, %v2289
      %v2322 = vsel %vm453, %v2290, 0.0
      %2323 = vadd.xlane.f32.xlu0 %v2322
      %v2324 = vpop.xlane.xlu0 %2323
      %v2325 = vsel %vm453, %v2291, 0.0
      %2326 = vadd.xlane.f32.xlu0 %v2325
      %v2327 = vpop.xlane.xlu0 %2326
      %v2328 = vsel %vm453, %v2292, 0.0
      %2329 = vadd.xlane.f32.xlu0 %v2328
      %v2330 = vpop.xlane.xlu0 %2329
      %v2331 = vsel %vm453, %v2293, 0.0
      %2332 = vadd.xlane.f32.xlu0 %v2331
      %v2333 = vpop.xlane.xlu0 %2332
      %v2334 = vsel %vm453, %v2294, 0.0
      %2335 = vadd.xlane.f32.xlu0 %v2334
      %v2336 = vpop.xlane.xlu0 %2335
      %v2337 = vsel %vm453, %v2295, 0.0
      %2338 = vadd.xlane.f32.xlu0 %v2337
      %v2339 = vpop.xlane.xlu0 %2338
      %v2340 = vsel %vm453, %v2296, 0.0
      %2341 = vadd.xlane.f32.xlu0 %v2340
      %v2342 = vpop.xlane.xlu0 %2341
      %v2343 = vsel %vm453, %v2297, 0.0
      %2344 = vadd.xlane.f32.xlu0 %v2343
      %v2345 = vpop.xlane.xlu0 %2344
      %v2346 = vsel %vm453, %v2298, 0.0
      %2347 = vadd.xlane.f32.xlu0 %v2346
      %v2348 = vpop.xlane.xlu0 %2347
      %v2349 = vsel %vm453, %v2299, 0.0
      %2350 = vadd.xlane.f32.xlu0 %v2349
      %v2351 = vpop.xlane.xlu0 %2350
      %v2352 = vsel %vm453, %v2300, 0.0
      %2353 = vadd.xlane.f32.xlu0 %v2352
      %v2354 = vpop.xlane.xlu0 %2353
      %v2355 = vsel %vm453, %v2301, 0.0
      %2356 = vadd.xlane.f32.xlu0 %v2355
      %v2357 = vpop.xlane.xlu0 %2356
      %v2358 = vsel %vm453, %v2302, 0.0
      %2359 = vadd.xlane.f32.xlu0 %v2358
      %v2360 = vpop.xlane.xlu0 %2359
      %v2361 = vsel %vm453, %v2303, 0.0
      %2362 = vadd.xlane.f32.xlu0 %v2361
      %v2363 = vpop.xlane.xlu0 %2362
      %v2364 = vsel %vm453, %v2304, 0.0
      %2365 = vadd.xlane.f32.xlu0 %v2364
      %v2366 = vpop.xlane.xlu0 %2365
      %v2367 = vsel %vm453, %v2305, 0.0
      %2368 = vadd.xlane.f32.xlu0 %v2367
      %v2369 = vpop.xlane.xlu0 %2368
      %v2370 = vsel %vm453, %v2306, 0.0
      %2371 = vadd.xlane.f32.xlu0 %v2370
      %v2372 = vpop.xlane.xlu0 %2371
      %v2373 = vsel %vm453, %v2307, 0.0
      %2374 = vadd.xlane.f32.xlu0 %v2373
      %v2375 = vpop.xlane.xlu0 %2374
      %v2376 = vsel %vm453, %v2308, 0.0
      %2377 = vadd.xlane.f32.xlu0 %v2376
      %v2378 = vpop.xlane.xlu0 %2377
      %v2379 = vsel %vm453, %v2309, 0.0
      %2380 = vadd.xlane.f32.xlu0 %v2379
      %v2381 = vpop.xlane.xlu0 %2380
      %v2382 = vsel %vm453, %v2310, 0.0
      %2383 = vadd.xlane.f32.xlu0 %v2382
      %v2384 = vpop.xlane.xlu0 %2383
      %v2385 = vsel %vm453, %v2311, 0.0
      %2386 = vadd.xlane.f32.xlu0 %v2385
      %v2387 = vpop.xlane.xlu0 %2386
      %v2388 = vsel %vm453, %v2312, 0.0
      %2389 = vadd.xlane.f32.xlu0 %v2388
      %v2390 = vpop.xlane.xlu0 %2389
      %v2391 = vsel %vm453, %v2313, 0.0
      %2392 = vadd.xlane.f32.xlu0 %v2391
      %v2393 = vpop.xlane.xlu0 %2392
      %v2394 = vsel %vm453, %v2314, 0.0
      %2395 = vadd.xlane.f32.xlu0 %v2394
      %v2396 = vpop.xlane.xlu0 %2395
      %v2397 = vsel %vm453, %v2315, 0.0
      %2398 = vadd.xlane.f32.xlu0 %v2397
      %v2399 = vpop.xlane.xlu0 %2398
      %v2400 = vsel %vm453, %v2316, 0.0
      %2401 = vadd.xlane.f32.xlu0 %v2400
      %v2402 = vpop.xlane.xlu0 %2401
      %v2403 = vsel %vm453, %v2317, 0.0
      %2404 = vadd.xlane.f32.xlu0 %v2403
      %v2405 = vpop.xlane.xlu0 %2404
      %v2406 = vsel %vm453, %v2318, 0.0
      %2407 = vadd.xlane.f32.xlu0 %v2406
      %v2408 = vpop.xlane.xlu0 %2407
      %v2409 = vsel %vm453, %v2319, 0.0
      %2410 = vadd.xlane.f32.xlu0 %v2409
      %v2411 = vpop.xlane.xlu0 %2410
      %v2412 = vsel %vm453, %v2320, 0.0
      %2413 = vadd.xlane.f32.xlu0 %v2412
      %v2414 = vpop.xlane.xlu0 %2413
      %v2415 = vsel %vm453, %v2321, 0.0
      %2416 = vadd.xlane.f32.xlu0 %v2415
      %v2417 = vpop.xlane.xlu0 %2416
      %v2418 = vadd.f32 %v2324, %v2327
      %v2419 = vadd.f32 %v2418, %v2330
      %v2420 = vadd.f32 %v2419, %v2333
      %v2421 = vadd.f32 %v2420, %v2336
      %v2422 = vadd.f32 %v2421, %v2339
      %v2423 = vadd.f32 %v2422, %v2342
      %v2424 = vadd.f32 %v2423, %v2345
      %v2425 = vadd.f32 %v2424, %v2348
      %v2426 = vadd.f32 %v2425, %v2351
      %v2427 = vadd.f32 %v2426, %v2354
      %v2428 = vadd.f32 %v2427, %v2357
      %v2429 = vadd.f32 %v2428, %v2360
      %v2430 = vadd.f32 %v2429, %v2363
      %v2431 = vadd.f32 %v2430, %v2366
      %v2432 = vadd.f32 %v2431, %v2369
      %v2433 = vadd.f32 %v2432, %v2372
      %v2434 = vadd.f32 %v2433, %v2375
      %v2435 = vadd.f32 %v2434, %v2378
      %v2436 = vadd.f32 %v2435, %v2381
      %v2437 = vadd.f32 %v2436, %v2384
      %v2438 = vadd.f32 %v2437, %v2387
      %v2439 = vadd.f32 %v2438, %v2390
      %v2440 = vadd.f32 %v2439, %v2393
      %v2441 = vadd.f32 %v2440, %v2396
      %v2442 = vadd.f32 %v2441, %v2399
      %v2443 = vadd.f32 %v2442, %v2402
      %v2444 = vadd.f32 %v2443, %v2405
      %v2445 = vadd.f32 %v2444, %v2408
      %v2446 = vadd.f32 %v2445, %v2411
      %v2447 = vadd.f32 %v2446, %v2414
      %v2448 = vadd.f32 %v2447, %v2417
      %v2449 = vrot.slane %v2448, 4
      %v2450 = vadd.f32 %v2448, %v2449
      %v2451 = vrot.slane %v2450, 2
      %v2452 = vadd.f32 %v2450, %v2451
      %v2453 = vrot.slane %v2452, 1
      %v2454 = vadd.f32 %v2452, %v2453
      %vm2455 = vcmask 0
      %2456 = vst.msk [vmem:[%s339] sm:$0x1] %vm2455, %v2454
      %s2457 = smul.u32 32, %s22
      %p2458 = scmp.lt.s32.totalorder %s21, 1
      %s2459 = scalar_select %p2458, %s21, 1
      %p2460 = scmp.lt.s32.totalorder %s2457, 63
      %s2461 = scalar_select %p2460, %s2457, 63
      %s2462 = smul.addr %s2459, 64
      %s2463 = sadd.s32 %s2461, %s2462
      %s2464 = smul.addr %s2463, 8
      %s2465 = scalar_lea.vmem %s4, %s2464
      %p2466 = scmp.lt.s32.totalorder %s21, 1
      %s2467 = scalar_select %p2466, %s21, 1
      %p2468 = scmp.lt.s32.totalorder %s22, 1
      %s2469 = scalar_select %p2468, %s22, 1
      %s2470 = smul.addr %s2467, 2
      %s2471 = sadd.s32 %s2469, %s2470
      %s2472 = scalar_lea.vmem %s5, %s2471
      // Predicated region
      $region37: #{tpu_custom_call.1} parent=35 // pred_check
        %p2473 = pneg %p155
      $region38: #{tpu_custom_call.1} parent=35 // pred_check_branch
        %2475 = sbr.rel (%p2473) target = $region40
      $region39: #{tpu_custom_call.1} parent=35 // pred_region
        %s2476 = smul.u32 32, %s22
      $region40: #{tpu_custom_call.1} parent=35 // pred_fallthru
        _
      // Predicated region
      $region41: #{tpu_custom_call.1} parent=35 // pred_check
        %p2477 = pneg %p183
      $region42: #{tpu_custom_call.1} parent=35 // pred_check_branch
        %2479 = sbr.rel (%p2477) target = $region44
      $region43: #{tpu_custom_call.1} parent=35 // pred_region
        _
      $region44: #{tpu_custom_call.1} parent=35 // pred_fallthru
        _
    $region36: #{tpu_custom_call.1} parent=5 // pred_fallthru
      _
    %p2480 = scmp.le.s32.totalorder 2, %s12
    // Predicated region
    $region45: #{tpu_custom_call.1} parent=5 // pred_check
      %p2481 = pneg %p2480
    $region46: #{tpu_custom_call.1} parent=5 // pred_check_branch
      %2483 = sbr.rel (%p2481) target = $region48
    $region47: #{tpu_custom_call.1} parent=5 // pred_region
      %s2484 = ssub.s32 %s12, 2
      // Predicated region
      $region49: #{tpu_custom_call.1} parent=47 // pred_check
        %p2485 = pneg %p161
      $region50: #{tpu_custom_call.1} parent=47 // pred_check_branch
        %2487 = sbr.rel (%p2485) target = $region52
      $region51: #{tpu_custom_call.1} parent=47 // pred_region
        %s2488 = smul.u32 32, %s24
        %p2489 = scmp.lt.s32.totalorder %s23, 1
        %s2490 = scalar_select %p2489, %s23, 1
        %p2491 = scmp.lt.s32.totalorder %s2488, 63
        %s2492 = scalar_select %p2491, %s2488, 63
        %s2493 = smul.addr %s2490, 64
        %s2494 = sadd.s32 %s2492, %s2493
        %s2495 = smul.addr %s2494, 8
        %s2496 = scalar_lea.vmem %s4, %s2495
      $region52: #{tpu_custom_call.1} parent=47 // pred_fallthru
        _
      // Predicated region
      $region53: #{tpu_custom_call.1} parent=47 // pred_check
        %p2497 = pneg %p189
      $region54: #{tpu_custom_call.1} parent=47 // pred_check_branch
        %2499 = sbr.rel (%p2497) target = $region56
      $region55: #{tpu_custom_call.1} parent=47 // pred_region
        %p2500 = scmp.lt.s32.totalorder %s23, 1
        %s2501 = scalar_select %p2500, %s23, 1
        %p2502 = scmp.lt.s32.totalorder %s24, 1
        %s2503 = scalar_select %p2502, %s24, 1
        %s2504 = smul.addr %s2501, 2
        %s2505 = sadd.s32 %s2503, %s2504
        %s2506 = scalar_lea.vmem %s5, %s2505
      $region56: #{tpu_custom_call.1} parent=47 // pred_fallthru
        _
    $region48: #{tpu_custom_call.1} parent=5 // pred_fallthru
      _
  $region6: #{tpu_custom_call.1} parent=0 // loop_footer
    %s16 = sadd.s32 1, %s12
  $region7: #{tpu_custom_call.1} parent=0 // loop_footer_branch
    %11 = sbr.rel target = $region3
  $region8: #{tpu_custom_call.1} parent=0 // loop_exit
    _

</llo_original>
